<compile_context>
chip_gen: v6e
topology: v6e:2x2x1
jax: 0.10.0
libtpu: 0.0.40
codegen_flags: <defaults>
</compile_context>

<pallas_src>
import math

import jax
import jax.numpy as jnp
from jax.experimental import pallas as pl
from jax.experimental.pallas import tpu as pltpu

# ----------------------------- config (small) --------------------------------
IMAGE_SIZE = 16
PATCH_SIZE = 8
NUM_CLASSES = 10
DIM = 32
DEPTH = 2
HEADS = 4
DIM_HEAD = 8
MLP_DIM = 64
CHANNELS = 3
BATCH = 2
LN_EPS = 1e-5

GRID_H = IMAGE_SIZE // PATCH_SIZE
NUM_PATCHES = GRID_H * GRID_H
PATCH_DIM = CHANNELS * PATCH_SIZE * PATCH_SIZE
SEQ = NUM_PATCHES + 1
INNER = HEADS * DIM_HEAD
ATTN_SCALE = DIM_HEAD ** -0.5
LOGIT_LANES = 128                      # lane-dense padded logits width

# packed layer-matrix slab row offsets (all multiples of 32, lanes start at 0)
_QKV_R0 = 0
_OUT_R0 = _QKV_R0 + DIM               # 32
_FF1_R0 = _OUT_R0 + INNER             # 64
_FF2_R0 = _FF1_R0 + DIM               # 96
_LM_ROWS = _FF2_R0 + MLP_DIM          # 160
_LM_LANES = 3 * INNER                 # 96


# ------------------------------ kernel helpers --------------------------------
def _layernorm(x, g, b):
    mu = jnp.mean(x, axis=-1, keepdims=True)
    var = jnp.mean(jnp.square(x - mu), axis=-1, keepdims=True)
    return (x - mu) * jax.lax.rsqrt(var + LN_EPS) * g + b


def _gelu(x):
    # exact GELU (matches torch.nn.GELU(approximate='none'))
    return 0.5 * x * (1.0 + jax.lax.erf(x * (1.0 / math.sqrt(2.0))))


# ------------------------------ fused ViT kernel -------------------------------
def _make_vit_kernel(b_tile):
    def kernel(patches_ref, patch_w_ref, emb_vec_ref, layer_mat_ref,
               layer_vec_ref, head_w_ref, head_b_ref, o_ref):
        bf16 = jnp.bfloat16
        f32 = jnp.float32

        ev = emb_vec_ref[...]                       # (9, DIM) f32
        patch_b = ev[0:1, :]
        cls_row = ev[1:2, :]
        pos = ev[2:2 + SEQ, :]
        head_ln_g = ev[2 + SEQ:3 + SEQ, :]
        head_ln_b = ev[3 + SEQ:4 + SEQ, :]

        # ---- patch-embed linear (batch flattened into matmul rows) ----
        pat = patches_ref[...].reshape(b_tile * NUM_PATCHES, PATCH_DIM)
        tok = jnp.dot(pat.astype(bf16), patch_w_ref[...],
                      preferred_element_type=f32) + patch_b       # (b*NP, DIM) f32

        # ---- cls token + positional embedding, entirely in vregs ----
        rows = []
        for b in range(b_tile):
            rows.append(cls_row)
            rows.append(tok[b * NUM_PATCHES:(b + 1) * NUM_PATCHES, :])
        x = rows[0] if len(rows) == 1 else jnp.concatenate(rows, axis=0)
        pos_all = pos if b_tile == 1 else jnp.concatenate([pos] * b_tile, axis=0)
        x = x + pos_all                               # (R, DIM) f32; emb_dropout = identity

        # ---- transformer layers (static unrolled; weights sliced from packed slabs) ----
        for d in range(DEPTH):
            lm = layer_mat_ref[d]                     # (160, 96) bf16
            lv = layer_vec_ref[d]                     # (8, MLP_DIM) f32
            qkv_w = lm[_QKV_R0:_QKV_R0 + DIM, 0:3 * INNER]      # head-major columns
            out_w = lm[_OUT_R0:_OUT_R0 + INNER, 0:DIM]
            ff_w1 = lm[_FF1_R0:_FF1_R0 + DIM, 0:MLP_DIM]
            ff_w2 = lm[_FF2_R0:_FF2_R0 + MLP_DIM, 0:DIM]
            ln1_g = lv[0:1, 0:DIM]
            ln1_b = lv[1:2, 0:DIM]
            out_b = lv[2:3, 0:DIM]
            ln2_g = lv[3:4, 0:DIM]
            ln2_b = lv[4:5, 0:DIM]
            ff_b2 = lv[5:6, 0:DIM]
            ff_b1 = lv[6:7, 0:MLP_DIM]

            # pre-LN multi-head self-attention + residual
            xn = _layernorm(x, ln1_g, ln1_b).astype(bf16)
            qkv = jnp.dot(xn, qkv_w, preferred_element_type=f32)  # (R, 3*INNER) head-major
            head_outs = []
            for h in range(HEADS):
                hs = qkv[:, h * 3 * DIM_HEAD:(h + 1) * 3 * DIM_HEAD]   # contiguous q|k|v
                q = hs[:, 0:DIM_HEAD].astype(bf16)
                k = hs[:, DIM_HEAD:2 * DIM_HEAD].astype(bf16)
                v = hs[:, 2 * DIM_HEAD:3 * DIM_HEAD].astype(bf16)
                pv = []
                for b in range(b_tile):               # per-image SEQxSEQ score (tiny)
                    r0 = b * SEQ
                    s = jax.lax.dot_general(
                        q[r0:r0 + SEQ, :], k[r0:r0 + SEQ, :],
                        (((1,), (1,)), ((), ())),
                        preferred_element_type=f32) * ATTN_SCALE
                    s = s - jnp.max(s, axis=-1, keepdims=True)
                    p = jnp.exp(s)
                    p = p * pl.reciprocal(jnp.sum(p, axis=-1, keepdims=True), approx=True)
                    pv.append(jnp.dot(p.astype(bf16), v[r0:r0 + SEQ, :],
                                      preferred_element_type=f32))
                head_outs.append(pv[0] if b_tile == 1 else jnp.concatenate(pv, axis=0))
            attn = head_outs[0] if HEADS == 1 else jnp.concatenate(head_outs, axis=1)
            o = jnp.dot(attn.astype(bf16), out_w, preferred_element_type=f32) + out_b
            x = x + o                                  # f32 residual; dropout = identity

            # pre-LN feed-forward + residual
            xn = _layernorm(x, ln2_g, ln2_b).astype(bf16)
            h1 = jnp.dot(xn, ff_w1, preferred_element_type=f32) + ff_b1
            h1 = _gelu(h1).astype(bf16)
            f = jnp.dot(h1, ff_w2, preferred_element_type=f32) + ff_b2
            x = x + f                                  # dropout = identity

        # ---- cls pool + head LayerNorm + classifier (lane-dense padded logits) ----
        if b_tile == 1:
            cls_tok = x[0:1, :]
        else:
            cls_tok = jnp.concatenate(
                [x[b * SEQ:b * SEQ + 1, :] for b in range(b_tile)], axis=0)
        cls_n = _layernorm(cls_tok, head_ln_g, head_ln_b).astype(bf16)
        o_ref[0] = (jnp.dot(cls_n, head_w_ref[...], preferred_element_type=f32)
                    + head_b_ref[...])                 # (b_tile, 128) unmasked store

    return kernel


# ------------------------------- parameters -----------------------------------
def init_params(key):
    keys = iter(jax.random.split(key, 16))

    def randn(shape, scale=0.02):
        return (scale * jax.random.normal(next(keys), shape)).astype(jnp.float32)

    return {
        "patch_w": randn((PATCH_DIM, DIM)),
        "patch_b": jnp.zeros((1, DIM), jnp.float32),
        "cls": randn((1, 1, DIM), scale=1.0),
        "pos": randn((1, SEQ, DIM), scale=1.0),
        # per-layer params stacked along a leading DEPTH axis
        "ln1_g": jnp.ones((DEPTH, 1, DIM), jnp.float32),
        "ln1_b": jnp.zeros((DEPTH, 1, DIM), jnp.float32),
        "qkv_w": randn((DEPTH, DIM, 3 * INNER)),      # to_qkv has no bias
        "out_w": randn((DEPTH, INNER, DIM)),
        "out_b": jnp.zeros((DEPTH, 1, DIM), jnp.float32),
        "ln2_g": jnp.ones((DEPTH, 1, DIM), jnp.float32),
        "ln2_b": jnp.zeros((DEPTH, 1, DIM), jnp.float32),
        "ff_w1": randn((DEPTH, DIM, MLP_DIM)),
        "ff_b1": jnp.zeros((DEPTH, 1, MLP_DIM), jnp.float32),
        "ff_w2": randn((DEPTH, MLP_DIM, DIM)),
        "ff_b2": jnp.zeros((DEPTH, 1, DIM), jnp.float32),
        "head_ln_g": jnp.ones((1, DIM), jnp.float32),
        "head_ln_b": jnp.zeros((1, DIM), jnp.float32),
        "head_w": randn((DIM, NUM_CLASSES)),
        "head_b": jnp.zeros((1, NUM_CLASSES), jnp.float32),
    }


def _pack_params(params):
    """Pack the 19 logical parameter arrays into 6 lane/sublane-dense buffers."""
    f32, bf16 = jnp.float32, jnp.bfloat16

    # qkv columns reordered head-major: head h -> contiguous [q_h | k_h | v_h]
    qkv = params["qkv_w"].reshape(DEPTH, DIM, 3, HEADS, DIM_HEAD)
    qkv = qkv.transpose(0, 1, 3, 2, 4).reshape(DEPTH, DIM, 3 * INNER)

    def pad_lanes(w, lanes):
        return jnp.pad(w, ((0, 0), (0, 0), (0, lanes - w.shape[-1])))

    layer_mats = jnp.concatenate([
        pad_lanes(qkv, _LM_LANES),                 # rows   0: 32  qkv_w (head-major)
        pad_lanes(params["out_w"], _LM_LANES),     # rows  32: 64  out_w
        pad_lanes(params["ff_w1"], _LM_LANES),     # rows  64: 96  ff_w1
        pad_lanes(params["ff_w2"], _LM_LANES),     # rows  96:160  ff_w2
    ], axis=1).astype(bf16)                        # (DEPTH, 160, 96) bf16

    layer_vecs = jnp.concatenate([
        pad_lanes(params["ln1_g"], MLP_DIM),       # row 0
        pad_lanes(params["ln1_b"], MLP_DIM),       # row 1
        pad_lanes(params["out_b"], MLP_DIM),       # row 2
        pad_lanes(params["ln2_g"], MLP_DIM),       # row 3
        pad_lanes(params["ln2_b"], MLP_DIM),       # row 4
        pad_lanes(params["ff_b2"], MLP_DIM),       # row 5
        params["ff_b1"],                           # row 6 (full 64 lanes)
        jnp.zeros((DEPTH, 1, MLP_DIM), f32),       # row 7 pad
    ], axis=1).astype(f32)                         # (DEPTH, 8, 64) f32

    emb_vecs = jnp.concatenate([
        params["patch_b"],                         # row 0
        params["cls"].reshape(1, DIM),             # row 1
        params["pos"].reshape(SEQ, DIM),           # rows 2..6
        params["head_ln_g"],                       # row 7
        params["head_ln_b"],                       # row 8
    ], axis=0).astype(f32)                         # (9, 32) f32

    head_w = jnp.pad(params["head_w"],
                     ((0, 0), (0, LOGIT_LANES - NUM_CLASSES))).astype(bf16)   # (32, 128)
    head_b = jnp.pad(params["head_b"],
                     ((0, 0), (0, LOGIT_LANES - NUM_CLASSES))).astype(f32)    # (1, 128)
    patch_w = params["patch_w"].astype(bf16)       # (192, 32) bf16
    return patch_w, emb_vecs, layer_mats, layer_vecs, head_w, head_b


def _pick_b_tile(batch):
    """Largest batch block <= 32 that still leaves >= 2 grid steps (v7x 2-TC)."""
    if batch <= 1:
        return 1
    best = 1
    for t in range(1, min(batch, 32) + 1):
        if batch % t == 0 and batch // t >= 2:
            best = t
    return best


def _const_spec(shape):
    zeros = (0,) * len(shape)
    return pl.BlockSpec(shape, lambda i: zeros)    # same (full) block every grid step


# -------------------------------- forward -------------------------------------
def vit_forward(params, x):
    B = x.shape[0]
    b_tile = _pick_b_tile(B)
    num_blocks = B // b_tile

    # Rearrange 'b c (h p1) (w p2) -> b (h w) (p1 p2 c)'  (single XLA op)
    xp = x.reshape(B, CHANNELS, GRID_H, PATCH_SIZE, GRID_H, PATCH_SIZE)
    xp = xp.transpose(0, 2, 4, 3, 5, 1)            # (B, h, w, p1, p2, C)
    patches = xp.reshape(B, NUM_PATCHES, PATCH_DIM)

    patch_w, emb_vecs, layer_mats, layer_vecs, head_w, head_b = _pack_params(params)
    weights = (patch_w, emb_vecs, layer_mats, layer_vecs, head_w, head_b)

    in_specs = [pl.BlockSpec((b_tile, NUM_PATCHES, PATCH_DIM), lambda i: (i, 0, 0))]
    in_specs += [_const_spec(w.shape) for w in weights]

    out = pl.pallas_call(
        _make_vit_kernel(b_tile),
        grid=(num_blocks,),
        in_specs=in_specs,
        out_specs=pl.BlockSpec((1, b_tile, LOGIT_LANES), lambda i: (i, 0, 0)),
        out_shape=jax.ShapeDtypeStruct((num_blocks, b_tile, LOGIT_LANES), jnp.float32),
        compiler_params=pltpu.CompilerParams(
            dimension_semantics=("parallel",),     # v7x: split grid across 2 TCs
        ),
    )(patches, *weights)
    return out.reshape(B, LOGIT_LANES)[:, :NUM_CLASSES]


# TODO(synk): train-mode Dropout (stochastic masking) is not implemented; eval-mode
# identity semantics are used, which match model.eval() inference.


if __name__ == "__main__":
    key = jax.random.PRNGKey(0)
    pkey, xkey = jax.random.split(key)
    params = init_params(pkey)
    x = jax.random.normal(xkey, (BATCH, CHANNELS, IMAGE_SIZE, IMAGE_SIZE), jnp.float32)

    logits = jax.jit(vit_forward)(params, x)
    jax.block_until_ready(logits)
    assert logits.shape == (BATCH, NUM_CLASSES)
    print("KERNEL_OK")
</pallas_src>

<mosaic_0001>
module attributes {stable_mosaic.version = 11 : i64} {
  func.func @kernel(%arg0: i32, %arg1: memref<1x4x192xf32, #tpu.memory_space<vmem>>, %arg2: memref<192x32xbf16, #tpu.memory_space<vmem>>, %arg3: memref<9x32xf32, #tpu.memory_space<vmem>>, %arg4: memref<2x160x96xbf16, #tpu.memory_space<vmem>>, %arg5: memref<2x8x64xf32, #tpu.memory_space<vmem>>, %arg6: memref<32x128xbf16, #tpu.memory_space<vmem>>, %arg7: memref<1x128xf32, #tpu.memory_space<vmem>>, %arg8: memref<1x1x128xf32, #tpu.memory_space<vmem>>) attributes {dimension_semantics = [#tpu.dimension_semantics<parallel>], iteration_bounds = array<i64: 2>, scalar_prefetch = 0 : i64, scratch_operands = 0 : i64, tpu.core_type = #tpu.core_type<tc>, window_params = [{transform_indices = @transform_0, window_bounds = array<i64: 1, 4, 192>}, {pipeline_mode = #tpu.pipeline_mode<synchronous>, transform_indices = @transform_1, window_bounds = array<i64: 192, 32>}, {pipeline_mode = #tpu.pipeline_mode<synchronous>, transform_indices = @transform_2, window_bounds = array<i64: 9, 32>}, {pipeline_mode = #tpu.pipeline_mode<synchronous>, transform_indices = @transform_3, window_bounds = array<i64: 2, 160, 96>}, {pipeline_mode = #tpu.pipeline_mode<synchronous>, transform_indices = @transform_4, window_bounds = array<i64: 2, 8, 64>}, {pipeline_mode = #tpu.pipeline_mode<synchronous>, transform_indices = @transform_5, window_bounds = array<i64: 32, 128>}, {pipeline_mode = #tpu.pipeline_mode<synchronous>, transform_indices = @transform_6, window_bounds = array<i64: 1, 128>}, {transform_indices = @transform_7, window_bounds = array<i64: 1, 1, 128>}]} {
    %c0 = arith.constant 0 : index
    %c0_0 = arith.constant 0 : index
    %0 = vector.load %arg3[%c0, %c0_0] : memref<9x32xf32, #tpu.memory_space<vmem>>, vector<9x32xf32>
    %1 = vector.extract_strided_slice %0 {offsets = [0, 0], sizes = [1, 32], strides = [1, 1]} : vector<9x32xf32> to vector<1x32xf32>
    %2 = vector.extract_strided_slice %0 {offsets = [1, 0], sizes = [1, 32], strides = [1, 1]} : vector<9x32xf32> to vector<1x32xf32>
    %3 = vector.extract_strided_slice %0 {offsets = [2, 0], sizes = [5, 32], strides = [1, 1]} : vector<9x32xf32> to vector<5x32xf32>
    %4 = vector.extract_strided_slice %0 {offsets = [7, 0], sizes = [1, 32], strides = [1, 1]} : vector<9x32xf32> to vector<1x32xf32>
    %5 = vector.extract_strided_slice %0 {offsets = [8, 0], sizes = [1, 32], strides = [1, 1]} : vector<9x32xf32> to vector<1x32xf32>
    %c0_1 = arith.constant 0 : index
    %c0_2 = arith.constant 0 : index
    %c0_3 = arith.constant 0 : index
    %6 = vector.load %arg1[%c0_1, %c0_2, %c0_3] : memref<1x4x192xf32, #tpu.memory_space<vmem>>, vector<1x4x192xf32>
    %7 = vector.shape_cast %6 : vector<1x4x192xf32> to vector<4x192xf32>
    %8 = arith.truncf %7 : vector<4x192xf32> to vector<4x192xbf16>
    %c0_4 = arith.constant 0 : index
    %c0_5 = arith.constant 0 : index
    %9 = vector.load %arg2[%c0_4, %c0_5] : memref<192x32xbf16, #tpu.memory_space<vmem>>, vector<192x32xbf16>
    %cst = arith.constant dense<0.000000e+00> : vector<4x32xf32>
    %10 = tpu.matmul %8, %9, %cst {dimension_numbers = #tpu.dot_dimension_numbers<[1], [0], [0], [1], [0, 0, 1, 1], [], []>} : vector<4x192xbf16>, vector<192x32xbf16>, vector<4x32xf32> -> vector<4x32xf32>
    %11 = vector.broadcast %1 : vector<1x32xf32> to vector<4x32xf32>
    %12 = arith.addf %10, %11 : vector<4x32xf32>
    %13 = tpu.concatenate %2, %12 in 0 : vector<1x32xf32>, vector<4x32xf32> -> vector<5x32xf32>
    %14 = arith.addf %13, %3 : vector<5x32xf32>
    %c0_6 = arith.constant 0 : index
    %c0_7 = arith.constant 0 : index
    %c0_8 = arith.constant 0 : index
    %15 = vector.load %arg4[%c0_6, %c0_7, %c0_8] : memref<2x160x96xbf16, #tpu.memory_space<vmem>>, vector<1x160x96xbf16>
    %16 = vector.shape_cast %15 : vector<1x160x96xbf16> to vector<160x96xbf16>
    %c0_9 = arith.constant 0 : index
    %c0_10 = arith.constant 0 : index
    %c0_11 = arith.constant 0 : index
    %17 = vector.load %arg5[%c0_9, %c0_10, %c0_11] : memref<2x8x64xf32, #tpu.memory_space<vmem>>, vector<1x8x64xf32>
    %18 = vector.shape_cast %17 : vector<1x8x64xf32> to vector<8x64xf32>
    %19 = vector.extract_strided_slice %16 {offsets = [0, 0], sizes = [32, 96], strides = [1, 1]} : vector<160x96xbf16> to vector<32x96xbf16>
    %20 = vector.extract_strided_slice %16 {offsets = [32, 0], sizes = [32, 32], strides = [1, 1]} : vector<160x96xbf16> to vector<32x32xbf16>
    %21 = vector.extract_strided_slice %16 {offsets = [64, 0], sizes = [32, 64], strides = [1, 1]} : vector<160x96xbf16> to vector<32x64xbf16>
    %22 = vector.extract_strided_slice %16 {offsets = [96, 0], sizes = [64, 32], strides = [1, 1]} : vector<160x96xbf16> to vector<64x32xbf16>
    %23 = vector.extract_strided_slice %18 {offsets = [0, 0], sizes = [1, 32], strides = [1, 1]} : vector<8x64xf32> to vector<1x32xf32>
    %24 = vector.extract_strided_slice %18 {offsets = [1, 0], sizes = [1, 32], strides = [1, 1]} : vector<8x64xf32> to vector<1x32xf32>
    %25 = vector.extract_strided_slice %18 {offsets = [2, 0], sizes = [1, 32], strides = [1, 1]} : vector<8x64xf32> to vector<1x32xf32>
    %26 = vector.extract_strided_slice %18 {offsets = [3, 0], sizes = [1, 32], strides = [1, 1]} : vector<8x64xf32> to vector<1x32xf32>
    %27 = vector.extract_strided_slice %18 {offsets = [4, 0], sizes = [1, 32], strides = [1, 1]} : vector<8x64xf32> to vector<1x32xf32>
    %28 = vector.extract_strided_slice %18 {offsets = [5, 0], sizes = [1, 32], strides = [1, 1]} : vector<8x64xf32> to vector<1x32xf32>
    %29 = vector.extract_strided_slice %18 {offsets = [6, 0], sizes = [1, 64], strides = [1, 1]} : vector<8x64xf32> to vector<1x64xf32>
    %cst_12 = arith.constant dense<0.000000e+00> : vector<5xf32>
    %30 = vector.multi_reduction <add>, %14, %cst_12 [1] : vector<5x32xf32> to vector<5xf32>
    %31 = vector.shape_cast %30 : vector<5xf32> to vector<5x1xf32>
    %cst_13 = arith.constant 3.200000e+01 : f32
    %32 = vector.broadcast %cst_13 : f32 to vector<5x1xf32>
    %33 = arith.divf %31, %32 : vector<5x1xf32>
    %34 = vector.broadcast %33 : vector<5x1xf32> to vector<5x32xf32>
    %35 = arith.subf %14, %34 : vector<5x32xf32>
    %36 = arith.mulf %35, %35 : vector<5x32xf32>
    %cst_14 = arith.constant dense<0.000000e+00> : vector<5xf32>
    %37 = vector.multi_reduction <add>, %36, %cst_14 [1] : vector<5x32xf32> to vector<5xf32>
    %38 = vector.shape_cast %37 : vector<5xf32> to vector<5x1xf32>
    %cst_15 = arith.constant 3.200000e+01 : f32
    %39 = vector.broadcast %cst_15 : f32 to vector<5x1xf32>
    %40 = arith.divf %38, %39 : vector<5x1xf32>
    %41 = vector.broadcast %33 : vector<5x1xf32> to vector<5x32xf32>
    %42 = arith.subf %14, %41 : vector<5x32xf32>
    %cst_16 = arith.constant 9.99999974E-6 : f32
    %43 = vector.broadcast %cst_16 : f32 to vector<5x1xf32>
    %44 = arith.addf %40, %43 : vector<5x1xf32>
    %45 = math.rsqrt %44 : vector<5x1xf32>
    %46 = vector.broadcast %45 : vector<5x1xf32> to vector<5x32xf32>
    %47 = arith.mulf %42, %46 : vector<5x32xf32>
    %48 = vector.broadcast %23 : vector<1x32xf32> to vector<5x32xf32>
    %49 = arith.mulf %47, %48 : vector<5x32xf32>
    %50 = vector.broadcast %24 : vector<1x32xf32> to vector<5x32xf32>
    %51 = arith.addf %49, %50 : vector<5x32xf32>
    %52 = arith.truncf %51 : vector<5x32xf32> to vector<5x32xbf16>
    %cst_17 = arith.constant dense<0.000000e+00> : vector<5x96xf32>
    %53 = tpu.matmul %52, %19, %cst_17 {dimension_numbers = #tpu.dot_dimension_numbers<[1], [0], [0], [1], [0, 0, 1, 1], [], []>} : vector<5x32xbf16>, vector<32x96xbf16>, vector<5x96xf32> -> vector<5x96xf32>
    %54 = vector.extract_strided_slice %53 {offsets = [0, 0], sizes = [5, 24], strides = [1, 1]} : vector<5x96xf32> to vector<5x24xf32>
    %55 = vector.extract_strided_slice %54 {offsets = [0, 0], sizes = [5, 8], strides = [1, 1]} : vector<5x24xf32> to vector<5x8xf32>
    %56 = arith.truncf %55 : vector<5x8xf32> to vector<5x8xbf16>
    %57 = vector.extract_strided_slice %54 {offsets = [0, 8], sizes = [5, 8], strides = [1, 1]} : vector<5x24xf32> to vector<5x8xf32>
    %58 = arith.truncf %57 : vector<5x8xf32> to vector<5x8xbf16>
    %59 = vector.extract_strided_slice %54 {offsets = [0, 16], sizes = [5, 8], strides = [1, 1]} : vector<5x24xf32> to vector<5x8xf32>
    %60 = arith.truncf %59 : vector<5x8xf32> to vector<5x8xbf16>
    %cst_18 = arith.constant dense<0.000000e+00> : vector<5x5xf32>
    %61 = tpu.matmul %56, %58, %cst_18 {dimension_numbers = #tpu.dot_dimension_numbers<[1], [1], [0], [0], [0, 0, 1, 0], [], []>} : vector<5x8xbf16>, vector<5x8xbf16>, vector<5x5xf32> -> vector<5x5xf32>
    %cst_19 = arith.constant 0.353553385 : f32
    %62 = vector.broadcast %cst_19 : f32 to vector<5x5xf32>
    %63 = arith.mulf %61, %62 : vector<5x5xf32>
    %cst_20 = arith.constant dense<0xFF800000> : vector<5xf32>
    %64 = vector.multi_reduction <maximumf>, %63, %cst_20 [1] : vector<5x5xf32> to vector<5xf32>
    %65 = vector.shape_cast %64 : vector<5xf32> to vector<5x1xf32>
    %66 = vector.broadcast %65 : vector<5x1xf32> to vector<5x5xf32>
    %67 = arith.subf %63, %66 : vector<5x5xf32>
    %68 = math.exp %67 : vector<5x5xf32>
    %cst_21 = arith.constant dense<0.000000e+00> : vector<5xf32>
    %69 = vector.multi_reduction <add>, %68, %cst_21 [1] : vector<5x5xf32> to vector<5xf32>
    %70 = vector.shape_cast %69 : vector<5xf32> to vector<5x1xf32>
    %71 = tpu.reciprocal %70 {approx = true} : vector<5x1xf32> -> vector<5x1xf32>
    %72 = vector.broadcast %71 : vector<5x1xf32> to vector<5x5xf32>
    %73 = arith.mulf %68, %72 : vector<5x5xf32>
    %74 = arith.truncf %73 : vector<5x5xf32> to vector<5x5xbf16>
    %cst_22 = arith.constant dense<0.000000e+00> : vector<5x8xf32>
    %75 = tpu.matmul %74, %60, %cst_22 {dimension_numbers = #tpu.dot_dimension_numbers<[1], [0], [0], [1], [0, 0, 1, 1], [], []>} : vector<5x5xbf16>, vector<5x8xbf16>, vector<5x8xf32> -> vector<5x8xf32>
    %76 = vector.extract_strided_slice %53 {offsets = [0, 24], sizes = [5, 24], strides = [1, 1]} : vector<5x96xf32> to vector<5x24xf32>
    %77 = vector.extract_strided_slice %76 {offsets = [0, 0], sizes = [5, 8], strides = [1, 1]} : vector<5x24xf32> to vector<5x8xf32>
    %78 = arith.truncf %77 : vector<5x8xf32> to vector<5x8xbf16>
    %79 = vector.extract_strided_slice %76 {offsets = [0, 8], sizes = [5, 8], strides = [1, 1]} : vector<5x24xf32> to vector<5x8xf32>
    %80 = arith.truncf %79 : vector<5x8xf32> to vector<5x8xbf16>
    %81 = vector.extract_strided_slice %76 {offsets = [0, 16], sizes = [5, 8], strides = [1, 1]} : vector<5x24xf32> to vector<5x8xf32>
    %82 = arith.truncf %81 : vector<5x8xf32> to vector<5x8xbf16>
    %cst_23 = arith.constant dense<0.000000e+00> : vector<5x5xf32>
    %83 = tpu.matmul %78, %80, %cst_23 {dimension_numbers = #tpu.dot_dimension_numbers<[1], [1], [0], [0], [0, 0, 1, 0], [], []>} : vector<5x8xbf16>, vector<5x8xbf16>, vector<5x5xf32> -> vector<5x5xf32>
    %cst_24 = arith.constant 0.353553385 : f32
    %84 = vector.broadcast %cst_24 : f32 to vector<5x5xf32>
    %85 = arith.mulf %83, %84 : vector<5x5xf32>
    %cst_25 = arith.constant dense<0xFF800000> : vector<5xf32>
    %86 = vector.multi_reduction <maximumf>, %85, %cst_25 [1] : vector<5x5xf32> to vector<5xf32>
    %87 = vector.shape_cast %86 : vector<5xf32> to vector<5x1xf32>
    %88 = vector.broadcast %87 : vector<5x1xf32> to vector<5x5xf32>
    %89 = arith.subf %85, %88 : vector<5x5xf32>
    %90 = math.exp %89 : vector<5x5xf32>
    %cst_26 = arith.constant dense<0.000000e+00> : vector<5xf32>
    %91 = vector.multi_reduction <add>, %90, %cst_26 [1] : vector<5x5xf32> to vector<5xf32>
    %92 = vector.shape_cast %91 : vector<5xf32> to vector<5x1xf32>
    %93 = tpu.reciprocal %92 {approx = true} : vector<5x1xf32> -> vector<5x1xf32>
    %94 = vector.broadcast %93 : vector<5x1xf32> to vector<5x5xf32>
    %95 = arith.mulf %90, %94 : vector<5x5xf32>
    %96 = arith.truncf %95 : vector<5x5xf32> to vector<5x5xbf16>
    %cst_27 = arith.constant dense<0.000000e+00> : vector<5x8xf32>
    %97 = tpu.matmul %96, %82, %cst_27 {dimension_numbers = #tpu.dot_dimension_numbers<[1], [0], [0], [1], [0, 0, 1, 1], [], []>} : vector<5x5xbf16>, vector<5x8xbf16>, vector<5x8xf32> -> vector<5x8xf32>
    %98 = vector.extract_strided_slice %53 {offsets = [0, 48], sizes = [5, 24], strides = [1, 1]} : vector<5x96xf32> to vector<5x24xf32>
    %99 = vector.extract_strided_slice %98 {offsets = [0, 0], sizes = [5, 8], strides = [1, 1]} : vector<5x24xf32> to vector<5x8xf32>
    %100 = arith.truncf %99 : vector<5x8xf32> to vector<5x8xbf16>
    %101 = vector.extract_strided_slice %98 {offsets = [0, 8], sizes = [5, 8], strides = [1, 1]} : vector<5x24xf32> to vector<5x8xf32>
    %102 = arith.truncf %101 : vector<5x8xf32> to vector<5x8xbf16>
    %103 = vector.extract_strided_slice %98 {offsets = [0, 16], sizes = [5, 8], strides = [1, 1]} : vector<5x24xf32> to vector<5x8xf32>
    %104 = arith.truncf %103 : vector<5x8xf32> to vector<5x8xbf16>
    %cst_28 = arith.constant dense<0.000000e+00> : vector<5x5xf32>
    %105 = tpu.matmul %100, %102, %cst_28 {dimension_numbers = #tpu.dot_dimension_numbers<[1], [1], [0], [0], [0, 0, 1, 0], [], []>} : vector<5x8xbf16>, vector<5x8xbf16>, vector<5x5xf32> -> vector<5x5xf32>
    %cst_29 = arith.constant 0.353553385 : f32
    %106 = vector.broadcast %cst_29 : f32 to vector<5x5xf32>
    %107 = arith.mulf %105, %106 : vector<5x5xf32>
    %cst_30 = arith.constant dense<0xFF800000> : vector<5xf32>
    %108 = vector.multi_reduction <maximumf>, %107, %cst_30 [1] : vector<5x5xf32> to vector<5xf32>
    %109 = vector.shape_cast %108 : vector<5xf32> to vector<5x1xf32>
    %110 = vector.broadcast %109 : vector<5x1xf32> to vector<5x5xf32>
    %111 = arith.subf %107, %110 : vector<5x5xf32>
    %112 = math.exp %111 : vector<5x5xf32>
    %cst_31 = arith.constant dense<0.000000e+00> : vector<5xf32>
    %113 = vector.multi_reduction <add>, %112, %cst_31 [1] : vector<5x5xf32> to vector<5xf32>
    %114 = vector.shape_cast %113 : vector<5xf32> to vector<5x1xf32>
    %115 = tpu.reciprocal %114 {approx = true} : vector<5x1xf32> -> vector<5x1xf32>
    %116 = vector.broadcast %115 : vector<5x1xf32> to vector<5x5xf32>
    %117 = arith.mulf %112, %116 : vector<5x5xf32>
    %118 = arith.truncf %117 : vector<5x5xf32> to vector<5x5xbf16>
    %cst_32 = arith.constant dense<0.000000e+00> : vector<5x8xf32>
    %119 = tpu.matmul %118, %104, %cst_32 {dimension_numbers = #tpu.dot_dimension_numbers<[1], [0], [0], [1], [0, 0, 1, 1], [], []>} : vector<5x5xbf16>, vector<5x8xbf16>, vector<5x8xf32> -> vector<5x8xf32>
    %120 = vector.extract_strided_slice %53 {offsets = [0, 72], sizes = [5, 24], strides = [1, 1]} : vector<5x96xf32> to vector<5x24xf32>
    %121 = vector.extract_strided_slice %120 {offsets = [0, 0], sizes = [5, 8], strides = [1, 1]} : vector<5x24xf32> to vector<5x8xf32>
    %122 = arith.truncf %121 : vector<5x8xf32> to vector<5x8xbf16>
    %123 = vector.extract_strided_slice %120 {offsets = [0, 8], sizes = [5, 8], strides = [1, 1]} : vector<5x24xf32> to vector<5x8xf32>
    %124 = arith.truncf %123 : vector<5x8xf32> to vector<5x8xbf16>
    %125 = vector.extract_strided_slice %120 {offsets = [0, 16], sizes = [5, 8], strides = [1, 1]} : vector<5x24xf32> to vector<5x8xf32>
    %126 = arith.truncf %125 : vector<5x8xf32> to vector<5x8xbf16>
    %cst_33 = arith.constant dense<0.000000e+00> : vector<5x5xf32>
    %127 = tpu.matmul %122, %124, %cst_33 {dimension_numbers = #tpu.dot_dimension_numbers<[1], [1], [0], [0], [0, 0, 1, 0], [], []>} : vector<5x8xbf16>, vector<5x8xbf16>, vector<5x5xf32> -> vector<5x5xf32>
    %cst_34 = arith.constant 0.353553385 : f32
    %128 = vector.broadcast %cst_34 : f32 to vector<5x5xf32>
    %129 = arith.mulf %127, %128 : vector<5x5xf32>
    %cst_35 = arith.constant dense<0xFF800000> : vector<5xf32>
    %130 = vector.multi_reduction <maximumf>, %129, %cst_35 [1] : vector<5x5xf32> to vector<5xf32>
    %131 = vector.shape_cast %130 : vector<5xf32> to vector<5x1xf32>
    %132 = vector.broadcast %131 : vector<5x1xf32> to vector<5x5xf32>
    %133 = arith.subf %129, %132 : vector<5x5xf32>
    %134 = math.exp %133 : vector<5x5xf32>
    %cst_36 = arith.constant dense<0.000000e+00> : vector<5xf32>
    %135 = vector.multi_reduction <add>, %134, %cst_36 [1] : vector<5x5xf32> to vector<5xf32>
    %136 = vector.shape_cast %135 : vector<5xf32> to vector<5x1xf32>
    %137 = tpu.reciprocal %136 {approx = true} : vector<5x1xf32> -> vector<5x1xf32>
    %138 = vector.broadcast %137 : vector<5x1xf32> to vector<5x5xf32>
    %139 = arith.mulf %134, %138 : vector<5x5xf32>
    %140 = arith.truncf %139 : vector<5x5xf32> to vector<5x5xbf16>
    %cst_37 = arith.constant dense<0.000000e+00> : vector<5x8xf32>
    %141 = tpu.matmul %140, %126, %cst_37 {dimension_numbers = #tpu.dot_dimension_numbers<[1], [0], [0], [1], [0, 0, 1, 1], [], []>} : vector<5x5xbf16>, vector<5x8xbf16>, vector<5x8xf32> -> vector<5x8xf32>
    %142 = tpu.concatenate %75, %97, %119, %141 in 1 : vector<5x8xf32>, vector<5x8xf32>, vector<5x8xf32>, vector<5x8xf32> -> vector<5x32xf32>
    %143 = arith.truncf %142 : vector<5x32xf32> to vector<5x32xbf16>
    %cst_38 = arith.constant dense<0.000000e+00> : vector<5x32xf32>
    %144 = tpu.matmul %143, %20, %cst_38 {dimension_numbers = #tpu.dot_dimension_numbers<[1], [0], [0], [1], [0, 0, 1, 1], [], []>} : vector<5x32xbf16>, vector<32x32xbf16>, vector<5x32xf32> -> vector<5x32xf32>
    %145 = vector.broadcast %25 : vector<1x32xf32> to vector<5x32xf32>
    %146 = arith.addf %144, %145 : vector<5x32xf32>
    %147 = arith.addf %14, %146 : vector<5x32xf32>
    %cst_39 = arith.constant dense<0.000000e+00> : vector<5xf32>
    %148 = vector.multi_reduction <add>, %147, %cst_39 [1] : vector<5x32xf32> to vector<5xf32>
    %149 = vector.shape_cast %148 : vector<5xf32> to vector<5x1xf32>
    %cst_40 = arith.constant 3.200000e+01 : f32
    %150 = vector.broadcast %cst_40 : f32 to vector<5x1xf32>
    %151 = arith.divf %149, %150 : vector<5x1xf32>
    %152 = vector.broadcast %151 : vector<5x1xf32> to vector<5x32xf32>
    %153 = arith.subf %147, %152 : vector<5x32xf32>
    %154 = arith.mulf %153, %153 : vector<5x32xf32>
    %cst_41 = arith.constant dense<0.000000e+00> : vector<5xf32>
    %155 = vector.multi_reduction <add>, %154, %cst_41 [1] : vector<5x32xf32> to vector<5xf32>
    %156 = vector.shape_cast %155 : vector<5xf32> to vector<5x1xf32>
    %cst_42 = arith.constant 3.200000e+01 : f32
    %157 = vector.broadcast %cst_42 : f32 to vector<5x1xf32>
    %158 = arith.divf %156, %157 : vector<5x1xf32>
    %159 = vector.broadcast %151 : vector<5x1xf32> to vector<5x32xf32>
    %160 = arith.subf %147, %159 : vector<5x32xf32>
    %cst_43 = arith.constant 9.99999974E-6 : f32
    %161 = vector.broadcast %cst_43 : f32 to vector<5x1xf32>
    %162 = arith.addf %158, %161 : vector<5x1xf32>
    %163 = math.rsqrt %162 : vector<5x1xf32>
    %164 = vector.broadcast %163 : vector<5x1xf32> to vector<5x32xf32>
    %165 = arith.mulf %160, %164 : vector<5x32xf32>
    %166 = vector.broadcast %26 : vector<1x32xf32> to vector<5x32xf32>
    %167 = arith.mulf %165, %166 : vector<5x32xf32>
    %168 = vector.broadcast %27 : vector<1x32xf32> to vector<5x32xf32>
    %169 = arith.addf %167, %168 : vector<5x32xf32>
    %170 = arith.truncf %169 : vector<5x32xf32> to vector<5x32xbf16>
    %cst_44 = arith.constant dense<0.000000e+00> : vector<5x64xf32>
    %171 = tpu.matmul %170, %21, %cst_44 {dimension_numbers = #tpu.dot_dimension_numbers<[1], [0], [0], [1], [0, 0, 1, 1], [], []>} : vector<5x32xbf16>, vector<32x64xbf16>, vector<5x64xf32> -> vector<5x64xf32>
    %172 = vector.broadcast %29 : vector<1x64xf32> to vector<5x64xf32>
    %173 = arith.addf %171, %172 : vector<5x64xf32>
    %cst_45 = arith.constant 5.000000e-01 : f32
    %174 = vector.broadcast %cst_45 : f32 to vector<5x64xf32>
    %175 = arith.mulf %174, %173 : vector<5x64xf32>
    %cst_46 = arith.constant 0.707106769 : f32
    %176 = vector.broadcast %cst_46 : f32 to vector<5x64xf32>
    %177 = arith.mulf %173, %176 : vector<5x64xf32>
    %178 = math.erf %177 : vector<5x64xf32>
    %cst_47 = arith.constant 1.000000e+00 : f32
    %179 = vector.broadcast %cst_47 : f32 to vector<5x64xf32>
    %180 = arith.addf %179, %178 : vector<5x64xf32>
    %181 = arith.mulf %175, %180 : vector<5x64xf32>
    %182 = arith.truncf %181 : vector<5x64xf32> to vector<5x64xbf16>
    %cst_48 = arith.constant dense<0.000000e+00> : vector<5x32xf32>
    %183 = tpu.matmul %182, %22, %cst_48 {dimension_numbers = #tpu.dot_dimension_numbers<[1], [0], [0], [1], [0, 0, 1, 1], [], []>} : vector<5x64xbf16>, vector<64x32xbf16>, vector<5x32xf32> -> vector<5x32xf32>
    %184 = vector.broadcast %28 : vector<1x32xf32> to vector<5x32xf32>
    %185 = arith.addf %183, %184 : vector<5x32xf32>
    %186 = arith.addf %147, %185 : vector<5x32xf32>
    %c1 = arith.constant 1 : index
    %c0_49 = arith.constant 0 : index
    %c0_50 = arith.constant 0 : index
    %187 = vector.load %arg4[%c1, %c0_49, %c0_50] : memref<2x160x96xbf16, #tpu.memory_space<vmem>>, vector<1x160x96xbf16>
    %188 = vector.shape_cast %187 : vector<1x160x96xbf16> to vector<160x96xbf16>
    %c1_51 = arith.constant 1 : index
    %c0_52 = arith.constant 0 : index
    %c0_53 = arith.constant 0 : index
    %189 = vector.load %arg5[%c1_51, %c0_52, %c0_53] : memref<2x8x64xf32, #tpu.memory_space<vmem>>, vector<1x8x64xf32>
    %190 = vector.shape_cast %189 : vector<1x8x64xf32> to vector<8x64xf32>
    %191 = vector.extract_strided_slice %188 {offsets = [0, 0], sizes = [32, 96], strides = [1, 1]} : vector<160x96xbf16> to vector<32x96xbf16>
    %192 = vector.extract_strided_slice %188 {offsets = [32, 0], sizes = [32, 32], strides = [1, 1]} : vector<160x96xbf16> to vector<32x32xbf16>
    %193 = vector.extract_strided_slice %188 {offsets = [64, 0], sizes = [32, 64], strides = [1, 1]} : vector<160x96xbf16> to vector<32x64xbf16>
    %194 = vector.extract_strided_slice %188 {offsets = [96, 0], sizes = [64, 32], strides = [1, 1]} : vector<160x96xbf16> to vector<64x32xbf16>
    %195 = vector.extract_strided_slice %190 {offsets = [0, 0], sizes = [1, 32], strides = [1, 1]} : vector<8x64xf32> to vector<1x32xf32>
    %196 = vector.extract_strided_slice %190 {offsets = [1, 0], sizes = [1, 32], strides = [1, 1]} : vector<8x64xf32> to vector<1x32xf32>
    %197 = vector.extract_strided_slice %190 {offsets = [2, 0], sizes = [1, 32], strides = [1, 1]} : vector<8x64xf32> to vector<1x32xf32>
    %198 = vector.extract_strided_slice %190 {offsets = [3, 0], sizes = [1, 32], strides = [1, 1]} : vector<8x64xf32> to vector<1x32xf32>
    %199 = vector.extract_strided_slice %190 {offsets = [4, 0], sizes = [1, 32], strides = [1, 1]} : vector<8x64xf32> to vector<1x32xf32>
    %200 = vector.extract_strided_slice %190 {offsets = [5, 0], sizes = [1, 32], strides = [1, 1]} : vector<8x64xf32> to vector<1x32xf32>
    %201 = vector.extract_strided_slice %190 {offsets = [6, 0], sizes = [1, 64], strides = [1, 1]} : vector<8x64xf32> to vector<1x64xf32>
    %cst_54 = arith.constant dense<0.000000e+00> : vector<5xf32>
    %202 = vector.multi_reduction <add>, %186, %cst_54 [1] : vector<5x32xf32> to vector<5xf32>
    %203 = vector.shape_cast %202 : vector<5xf32> to vector<5x1xf32>
    %cst_55 = arith.constant 3.200000e+01 : f32
    %204 = vector.broadcast %cst_55 : f32 to vector<5x1xf32>
    %205 = arith.divf %203, %204 : vector<5x1xf32>
    %206 = vector.broadcast %205 : vector<5x1xf32> to vector<5x32xf32>
    %207 = arith.subf %186, %206 : vector<5x32xf32>
    %208 = arith.mulf %207, %207 : vector<5x32xf32>
    %cst_56 = arith.constant dense<0.000000e+00> : vector<5xf32>
    %209 = vector.multi_reduction <add>, %208, %cst_56 [1] : vector<5x32xf32> to vector<5xf32>
    %210 = vector.shape_cast %209 : vector<5xf32> to vector<5x1xf32>
    %cst_57 = arith.constant 3.200000e+01 : f32
    %211 = vector.broadcast %cst_57 : f32 to vector<5x1xf32>
    %212 = arith.divf %210, %211 : vector<5x1xf32>
    %213 = vector.broadcast %205 : vector<5x1xf32> to vector<5x32xf32>
    %214 = arith.subf %186, %213 : vector<5x32xf32>
    %cst_58 = arith.constant 9.99999974E-6 : f32
    %215 = vector.broadcast %cst_58 : f32 to vector<5x1xf32>
    %216 = arith.addf %212, %215 : vector<5x1xf32>
    %217 = math.rsqrt %216 : vector<5x1xf32>
    %218 = vector.broadcast %217 : vector<5x1xf32> to vector<5x32xf32>
    %219 = arith.mulf %214, %218 : vector<5x32xf32>
    %220 = vector.broadcast %195 : vector<1x32xf32> to vector<5x32xf32>
    %221 = arith.mulf %219, %220 : vector<5x32xf32>
    %222 = vector.broadcast %196 : vector<1x32xf32> to vector<5x32xf32>
    %223 = arith.addf %221, %222 : vector<5x32xf32>
    %224 = arith.truncf %223 : vector<5x32xf32> to vector<5x32xbf16>
    %cst_59 = arith.constant dense<0.000000e+00> : vector<5x96xf32>
    %225 = tpu.matmul %224, %191, %cst_59 {dimension_numbers = #tpu.dot_dimension_numbers<[1], [0], [0], [1], [0, 0, 1, 1], [], []>} : vector<5x32xbf16>, vector<32x96xbf16>, vector<5x96xf32> -> vector<5x96xf32>
    %226 = vector.extract_strided_slice %225 {offsets = [0, 0], sizes = [5, 24], strides = [1, 1]} : vector<5x96xf32> to vector<5x24xf32>
    %227 = vector.extract_strided_slice %226 {offsets = [0, 0], sizes = [5, 8], strides = [1, 1]} : vector<5x24xf32> to vector<5x8xf32>
    %228 = arith.truncf %227 : vector<5x8xf32> to vector<5x8xbf16>
    %229 = vector.extract_strided_slice %226 {offsets = [0, 8], sizes = [5, 8], strides = [1, 1]} : vector<5x24xf32> to vector<5x8xf32>
    %230 = arith.truncf %229 : vector<5x8xf32> to vector<5x8xbf16>
    %231 = vector.extract_strided_slice %226 {offsets = [0, 16], sizes = [5, 8], strides = [1, 1]} : vector<5x24xf32> to vector<5x8xf32>
    %232 = arith.truncf %231 : vector<5x8xf32> to vector<5x8xbf16>
    %cst_60 = arith.constant dense<0.000000e+00> : vector<5x5xf32>
    %233 = tpu.matmul %228, %230, %cst_60 {dimension_numbers = #tpu.dot_dimension_numbers<[1], [1], [0], [0], [0, 0, 1, 0], [], []>} : vector<5x8xbf16>, vector<5x8xbf16>, vector<5x5xf32> -> vector<5x5xf32>
    %cst_61 = arith.constant 0.353553385 : f32
    %234 = vector.broadcast %cst_61 : f32 to vector<5x5xf32>
    %235 = arith.mulf %233, %234 : vector<5x5xf32>
    %cst_62 = arith.constant dense<0xFF800000> : vector<5xf32>
    %236 = vector.multi_reduction <maximumf>, %235, %cst_62 [1] : vector<5x5xf32> to vector<5xf32>
    %237 = vector.shape_cast %236 : vector<5xf32> to vector<5x1xf32>
    %238 = vector.broadcast %237 : vector<5x1xf32> to vector<5x5xf32>
    %239 = arith.subf %235, %238 : vector<5x5xf32>
    %240 = math.exp %239 : vector<5x5xf32>
    %cst_63 = arith.constant dense<0.000000e+00> : vector<5xf32>
    %241 = vector.multi_reduction <add>, %240, %cst_63 [1] : vector<5x5xf32> to vector<5xf32>
    %242 = vector.shape_cast %241 : vector<5xf32> to vector<5x1xf32>
    %243 = tpu.reciprocal %242 {approx = true} : vector<5x1xf32> -> vector<5x1xf32>
    %244 = vector.broadcast %243 : vector<5x1xf32> to vector<5x5xf32>
    %245 = arith.mulf %240, %244 : vector<5x5xf32>
    %246 = arith.truncf %245 : vector<5x5xf32> to vector<5x5xbf16>
    %cst_64 = arith.constant dense<0.000000e+00> : vector<5x8xf32>
    %247 = tpu.matmul %246, %232, %cst_64 {dimension_numbers = #tpu.dot_dimension_numbers<[1], [0], [0], [1], [0, 0, 1, 1], [], []>} : vector<5x5xbf16>, vector<5x8xbf16>, vector<5x8xf32> -> vector<5x8xf32>
    %248 = vector.extract_strided_slice %225 {offsets = [0, 24], sizes = [5, 24], strides = [1, 1]} : vector<5x96xf32> to vector<5x24xf32>
    %249 = vector.extract_strided_slice %248 {offsets = [0, 0], sizes = [5, 8], strides = [1, 1]} : vector<5x24xf32> to vector<5x8xf32>
    %250 = arith.truncf %249 : vector<5x8xf32> to vector<5x8xbf16>
    %251 = vector.extract_strided_slice %248 {offsets = [0, 8], sizes = [5, 8], strides = [1, 1]} : vector<5x24xf32> to vector<5x8xf32>
    %252 = arith.truncf %251 : vector<5x8xf32> to vector<5x8xbf16>
    %253 = vector.extract_strided_slice %248 {offsets = [0, 16], sizes = [5, 8], strides = [1, 1]} : vector<5x24xf32> to vector<5x8xf32>
    %254 = arith.truncf %253 : vector<5x8xf32> to vector<5x8xbf16>
    %cst_65 = arith.constant dense<0.000000e+00> : vector<5x5xf32>
    %255 = tpu.matmul %250, %252, %cst_65 {dimension_numbers = #tpu.dot_dimension_numbers<[1], [1], [0], [0], [0, 0, 1, 0], [], []>} : vector<5x8xbf16>, vector<5x8xbf16>, vector<5x5xf32> -> vector<5x5xf32>
    %cst_66 = arith.constant 0.353553385 : f32
    %256 = vector.broadcast %cst_66 : f32 to vector<5x5xf32>
    %257 = arith.mulf %255, %256 : vector<5x5xf32>
    %cst_67 = arith.constant dense<0xFF800000> : vector<5xf32>
    %258 = vector.multi_reduction <maximumf>, %257, %cst_67 [1] : vector<5x5xf32> to vector<5xf32>
    %259 = vector.shape_cast %258 : vector<5xf32> to vector<5x1xf32>
    %260 = vector.broadcast %259 : vector<5x1xf32> to vector<5x5xf32>
    %261 = arith.subf %257, %260 : vector<5x5xf32>
    %262 = math.exp %261 : vector<5x5xf32>
    %cst_68 = arith.constant dense<0.000000e+00> : vector<5xf32>
    %263 = vector.multi_reduction <add>, %262, %cst_68 [1] : vector<5x5xf32> to vector<5xf32>
    %264 = vector.shape_cast %263 : vector<5xf32> to vector<5x1xf32>
    %265 = tpu.reciprocal %264 {approx = true} : vector<5x1xf32> -> vector<5x1xf32>
    %266 = vector.broadcast %265 : vector<5x1xf32> to vector<5x5xf32>
    %267 = arith.mulf %262, %266 : vector<5x5xf32>
    %268 = arith.truncf %267 : vector<5x5xf32> to vector<5x5xbf16>
    %cst_69 = arith.constant dense<0.000000e+00> : vector<5x8xf32>
    %269 = tpu.matmul %268, %254, %cst_69 {dimension_numbers = #tpu.dot_dimension_numbers<[1], [0], [0], [1], [0, 0, 1, 1], [], []>} : vector<5x5xbf16>, vector<5x8xbf16>, vector<5x8xf32> -> vector<5x8xf32>
    %270 = vector.extract_strided_slice %225 {offsets = [0, 48], sizes = [5, 24], strides = [1, 1]} : vector<5x96xf32> to vector<5x24xf32>
    %271 = vector.extract_strided_slice %270 {offsets = [0, 0], sizes = [5, 8], strides = [1, 1]} : vector<5x24xf32> to vector<5x8xf32>
    %272 = arith.truncf %271 : vector<5x8xf32> to vector<5x8xbf16>
    %273 = vector.extract_strided_slice %270 {offsets = [0, 8], sizes = [5, 8], strides = [1, 1]} : vector<5x24xf32> to vector<5x8xf32>
    %274 = arith.truncf %273 : vector<5x8xf32> to vector<5x8xbf16>
    %275 = vector.extract_strided_slice %270 {offsets = [0, 16], sizes = [5, 8], strides = [1, 1]} : vector<5x24xf32> to vector<5x8xf32>
    %276 = arith.truncf %275 : vector<5x8xf32> to vector<5x8xbf16>
    %cst_70 = arith.constant dense<0.000000e+00> : vector<5x5xf32>
    %277 = tpu.matmul %272, %274, %cst_70 {dimension_numbers = #tpu.dot_dimension_numbers<[1], [1], [0], [0], [0, 0, 1, 0], [], []>} : vector<5x8xbf16>, vector<5x8xbf16>, vector<5x5xf32> -> vector<5x5xf32>
    %cst_71 = arith.constant 0.353553385 : f32
    %278 = vector.broadcast %cst_71 : f32 to vector<5x5xf32>
    %279 = arith.mulf %277, %278 : vector<5x5xf32>
    %cst_72 = arith.constant dense<0xFF800000> : vector<5xf32>
    %280 = vector.multi_reduction <maximumf>, %279, %cst_72 [1] : vector<5x5xf32> to vector<5xf32>
    %281 = vector.shape_cast %280 : vector<5xf32> to vector<5x1xf32>
    %282 = vector.broadcast %281 : vector<5x1xf32> to vector<5x5xf32>
    %283 = arith.subf %279, %282 : vector<5x5xf32>
    %284 = math.exp %283 : vector<5x5xf32>
    %cst_73 = arith.constant dense<0.000000e+00> : vector<5xf32>
    %285 = vector.multi_reduction <add>, %284, %cst_73 [1] : vector<5x5xf32> to vector<5xf32>
    %286 = vector.shape_cast %285 : vector<5xf32> to vector<5x1xf32>
    %287 = tpu.reciprocal %286 {approx = true} : vector<5x1xf32> -> vector<5x1xf32>
    %288 = vector.broadcast %287 : vector<5x1xf32> to vector<5x5xf32>
    %289 = arith.mulf %284, %288 : vector<5x5xf32>
    %290 = arith.truncf %289 : vector<5x5xf32> to vector<5x5xbf16>
    %cst_74 = arith.constant dense<0.000000e+00> : vector<5x8xf32>
    %291 = tpu.matmul %290, %276, %cst_74 {dimension_numbers = #tpu.dot_dimension_numbers<[1], [0], [0], [1], [0, 0, 1, 1], [], []>} : vector<5x5xbf16>, vector<5x8xbf16>, vector<5x8xf32> -> vector<5x8xf32>
    %292 = vector.extract_strided_slice %225 {offsets = [0, 72], sizes = [5, 24], strides = [1, 1]} : vector<5x96xf32> to vector<5x24xf32>
    %293 = vector.extract_strided_slice %292 {offsets = [0, 0], sizes = [5, 8], strides = [1, 1]} : vector<5x24xf32> to vector<5x8xf32>
    %294 = arith.truncf %293 : vector<5x8xf32> to vector<5x8xbf16>
    %295 = vector.extract_strided_slice %292 {offsets = [0, 8], sizes = [5, 8], strides = [1, 1]} : vector<5x24xf32> to vector<5x8xf32>
    %296 = arith.truncf %295 : vector<5x8xf32> to vector<5x8xbf16>
    %297 = vector.extract_strided_slice %292 {offsets = [0, 16], sizes = [5, 8], strides = [1, 1]} : vector<5x24xf32> to vector<5x8xf32>
    %298 = arith.truncf %297 : vector<5x8xf32> to vector<5x8xbf16>
    %cst_75 = arith.constant dense<0.000000e+00> : vector<5x5xf32>
    %299 = tpu.matmul %294, %296, %cst_75 {dimension_numbers = #tpu.dot_dimension_numbers<[1], [1], [0], [0], [0, 0, 1, 0], [], []>} : vector<5x8xbf16>, vector<5x8xbf16>, vector<5x5xf32> -> vector<5x5xf32>
    %cst_76 = arith.constant 0.353553385 : f32
    %300 = vector.broadcast %cst_76 : f32 to vector<5x5xf32>
    %301 = arith.mulf %299, %300 : vector<5x5xf32>
    %cst_77 = arith.constant dense<0xFF800000> : vector<5xf32>
    %302 = vector.multi_reduction <maximumf>, %301, %cst_77 [1] : vector<5x5xf32> to vector<5xf32>
    %303 = vector.shape_cast %302 : vector<5xf32> to vector<5x1xf32>
    %304 = vector.broadcast %303 : vector<5x1xf32> to vector<5x5xf32>
    %305 = arith.subf %301, %304 : vector<5x5xf32>
    %306 = math.exp %305 : vector<5x5xf32>
    %cst_78 = arith.constant dense<0.000000e+00> : vector<5xf32>
    %307 = vector.multi_reduction <add>, %306, %cst_78 [1] : vector<5x5xf32> to vector<5xf32>
    %308 = vector.shape_cast %307 : vector<5xf32> to vector<5x1xf32>
    %309 = tpu.reciprocal %308 {approx = true} : vector<5x1xf32> -> vector<5x1xf32>
    %310 = vector.broadcast %309 : vector<5x1xf32> to vector<5x5xf32>
    %311 = arith.mulf %306, %310 : vector<5x5xf32>
    %312 = arith.truncf %311 : vector<5x5xf32> to vector<5x5xbf16>
    %cst_79 = arith.constant dense<0.000000e+00> : vector<5x8xf32>
    %313 = tpu.matmul %312, %298, %cst_79 {dimension_numbers = #tpu.dot_dimension_numbers<[1], [0], [0], [1], [0, 0, 1, 1], [], []>} : vector<5x5xbf16>, vector<5x8xbf16>, vector<5x8xf32> -> vector<5x8xf32>
    %314 = tpu.concatenate %247, %269, %291, %313 in 1 : vector<5x8xf32>, vector<5x8xf32>, vector<5x8xf32>, vector<5x8xf32> -> vector<5x32xf32>
    %315 = arith.truncf %314 : vector<5x32xf32> to vector<5x32xbf16>
    %cst_80 = arith.constant dense<0.000000e+00> : vector<5x32xf32>
    %316 = tpu.matmul %315, %192, %cst_80 {dimension_numbers = #tpu.dot_dimension_numbers<[1], [0], [0], [1], [0, 0, 1, 1], [], []>} : vector<5x32xbf16>, vector<32x32xbf16>, vector<5x32xf32> -> vector<5x32xf32>
    %317 = vector.broadcast %197 : vector<1x32xf32> to vector<5x32xf32>
    %318 = arith.addf %316, %317 : vector<5x32xf32>
    %319 = arith.addf %186, %318 : vector<5x32xf32>
    %cst_81 = arith.constant dense<0.000000e+00> : vector<5xf32>
    %320 = vector.multi_reduction <add>, %319, %cst_81 [1] : vector<5x32xf32> to vector<5xf32>
    %321 = vector.shape_cast %320 : vector<5xf32> to vector<5x1xf32>
    %cst_82 = arith.constant 3.200000e+01 : f32
    %322 = vector.broadcast %cst_82 : f32 to vector<5x1xf32>
    %323 = arith.divf %321, %322 : vector<5x1xf32>
    %324 = vector.broadcast %323 : vector<5x1xf32> to vector<5x32xf32>
    %325 = arith.subf %319, %324 : vector<5x32xf32>
    %326 = arith.mulf %325, %325 : vector<5x32xf32>
    %cst_83 = arith.constant dense<0.000000e+00> : vector<5xf32>
    %327 = vector.multi_reduction <add>, %326, %cst_83 [1] : vector<5x32xf32> to vector<5xf32>
    %328 = vector.shape_cast %327 : vector<5xf32> to vector<5x1xf32>
    %cst_84 = arith.constant 3.200000e+01 : f32
    %329 = vector.broadcast %cst_84 : f32 to vector<5x1xf32>
    %330 = arith.divf %328, %329 : vector<5x1xf32>
    %331 = vector.broadcast %323 : vector<5x1xf32> to vector<5x32xf32>
    %332 = arith.subf %319, %331 : vector<5x32xf32>
    %cst_85 = arith.constant 9.99999974E-6 : f32
    %333 = vector.broadcast %cst_85 : f32 to vector<5x1xf32>
    %334 = arith.addf %330, %333 : vector<5x1xf32>
    %335 = math.rsqrt %334 : vector<5x1xf32>
    %336 = vector.broadcast %335 : vector<5x1xf32> to vector<5x32xf32>
    %337 = arith.mulf %332, %336 : vector<5x32xf32>
    %338 = vector.broadcast %198 : vector<1x32xf32> to vector<5x32xf32>
    %339 = arith.mulf %337, %338 : vector<5x32xf32>
    %340 = vector.broadcast %199 : vector<1x32xf32> to vector<5x32xf32>
    %341 = arith.addf %339, %340 : vector<5x32xf32>
    %342 = arith.truncf %341 : vector<5x32xf32> to vector<5x32xbf16>
    %cst_86 = arith.constant dense<0.000000e+00> : vector<5x64xf32>
    %343 = tpu.matmul %342, %193, %cst_86 {dimension_numbers = #tpu.dot_dimension_numbers<[1], [0], [0], [1], [0, 0, 1, 1], [], []>} : vector<5x32xbf16>, vector<32x64xbf16>, vector<5x64xf32> -> vector<5x64xf32>
    %344 = vector.broadcast %201 : vector<1x64xf32> to vector<5x64xf32>
    %345 = arith.addf %343, %344 : vector<5x64xf32>
    %cst_87 = arith.constant 5.000000e-01 : f32
    %346 = vector.broadcast %cst_87 : f32 to vector<5x64xf32>
    %347 = arith.mulf %346, %345 : vector<5x64xf32>
    %cst_88 = arith.constant 0.707106769 : f32
    %348 = vector.broadcast %cst_88 : f32 to vector<5x64xf32>
    %349 = arith.mulf %345, %348 : vector<5x64xf32>
    %350 = math.erf %349 : vector<5x64xf32>
    %cst_89 = arith.constant 1.000000e+00 : f32
    %351 = vector.broadcast %cst_89 : f32 to vector<5x64xf32>
    %352 = arith.addf %351, %350 : vector<5x64xf32>
    %353 = arith.mulf %347, %352 : vector<5x64xf32>
    %354 = arith.truncf %353 : vector<5x64xf32> to vector<5x64xbf16>
    %cst_90 = arith.constant dense<0.000000e+00> : vector<5x32xf32>
    %355 = tpu.matmul %354, %194, %cst_90 {dimension_numbers = #tpu.dot_dimension_numbers<[1], [0], [0], [1], [0, 0, 1, 1], [], []>} : vector<5x64xbf16>, vector<64x32xbf16>, vector<5x32xf32> -> vector<5x32xf32>
    %356 = vector.broadcast %200 : vector<1x32xf32> to vector<5x32xf32>
    %357 = arith.addf %355, %356 : vector<5x32xf32>
    %358 = arith.addf %319, %357 : vector<5x32xf32>
    %359 = vector.extract_strided_slice %358 {offsets = [0, 0], sizes = [1, 32], strides = [1, 1]} : vector<5x32xf32> to vector<1x32xf32>
    %cst_91 = arith.constant dense<0.000000e+00> : vector<1xf32>
    %360 = vector.multi_reduction <add>, %359, %cst_91 [1] : vector<1x32xf32> to vector<1xf32>
    %361 = vector.shape_cast %360 : vector<1xf32> to vector<1x1xf32>
    %cst_92 = arith.constant 3.200000e+01 : f32
    %362 = vector.broadcast %cst_92 : f32 to vector<1x1xf32>
    %363 = arith.divf %361, %362 : vector<1x1xf32>
    %364 = vector.broadcast %363 : vector<1x1xf32> to vector<1x32xf32>
    %365 = arith.subf %359, %364 : vector<1x32xf32>
    %366 = arith.mulf %365, %365 : vector<1x32xf32>
    %cst_93 = arith.constant dense<0.000000e+00> : vector<1xf32>
    %367 = vector.multi_reduction <add>, %366, %cst_93 [1] : vector<1x32xf32> to vector<1xf32>
    %368 = vector.shape_cast %367 : vector<1xf32> to vector<1x1xf32>
    %cst_94 = arith.constant 3.200000e+01 : f32
    %369 = vector.broadcast %cst_94 : f32 to vector<1x1xf32>
    %370 = arith.divf %368, %369 : vector<1x1xf32>
    %371 = vector.broadcast %363 : vector<1x1xf32> to vector<1x32xf32>
    %372 = arith.subf %359, %371 : vector<1x32xf32>
    %cst_95 = arith.constant 9.99999974E-6 : f32
    %373 = vector.broadcast %cst_95 : f32 to vector<1x1xf32>
    %374 = arith.addf %370, %373 : vector<1x1xf32>
    %375 = math.rsqrt %374 : vector<1x1xf32>
    %376 = vector.broadcast %375 : vector<1x1xf32> to vector<1x32xf32>
    %377 = arith.mulf %372, %376 : vector<1x32xf32>
    %378 = arith.mulf %377, %4 : vector<1x32xf32>
    %379 = arith.addf %378, %5 : vector<1x32xf32>
    %380 = arith.truncf %379 : vector<1x32xf32> to vector<1x32xbf16>
    %c0_96 = arith.constant 0 : index
    %c0_97 = arith.constant 0 : index
    %381 = vector.load %arg6[%c0_96, %c0_97] : memref<32x128xbf16, #tpu.memory_space<vmem>>, vector<32x128xbf16>
    %cst_98 = arith.constant dense<0.000000e+00> : vector<1x128xf32>
    %382 = tpu.matmul %380, %381, %cst_98 {dimension_numbers = #tpu.dot_dimension_numbers<[1], [0], [0], [1], [0, 0, 1, 1], [], []>} : vector<1x32xbf16>, vector<32x128xbf16>, vector<1x128xf32> -> vector<1x128xf32>
    %c0_99 = arith.constant 0 : index
    %c0_100 = arith.constant 0 : index
    %383 = vector.load %arg7[%c0_99, %c0_100] : memref<1x128xf32, #tpu.memory_space<vmem>>, vector<1x128xf32>
    %384 = arith.addf %382, %383 : vector<1x128xf32>
    %c0_101 = arith.constant 0 : index
    %c0_102 = arith.constant 0 : index
    %c0_103 = arith.constant 0 : index
    %385 = vector.load %arg8[%c0_101, %c0_102, %c0_103] : memref<1x1x128xf32, #tpu.memory_space<vmem>>, vector<1x1x128xf32>
    %386 = vector.shape_cast %385 : vector<1x1x128xf32> to vector<1x128xf32>
    %387 = vector.shape_cast %384 : vector<1x128xf32> to vector<1x1x128xf32>
    tpu.vector_store %arg8[%c0_101, %c0_102, %c0_103], %387 {strides = array<i32>} : memref<1x1x128xf32, #tpu.memory_space<vmem>>, vector<1x1x128xf32>,
    return
  }
  func.func @transform_0(%arg0: i32) -> (i32, i32, i32) {
    %c0_i32 = arith.constant 0 : i32
    %c0_i32_0 = arith.constant 0 : i32
    %c0_i32_1 = arith.constant 0 : i32
    return %arg0, %c0_i32, %c0_i32_0 : i32, i32, i32
  }
  func.func @transform_1(%arg0: i32) -> (i32, i32) {
    %c0_i32 = arith.constant 0 : i32
    %c0_i32_0 = arith.constant 0 : i32
    %c0_i32_1 = arith.constant 0 : i32
    return %c0_i32, %c0_i32_0 : i32, i32
  }
  func.func @transform_2(%arg0: i32) -> (i32, i32) {
    %c0_i32 = arith.constant 0 : i32
    %c0_i32_0 = arith.constant 0 : i32
    %c0_i32_1 = arith.constant 0 : i32
    return %c0_i32, %c0_i32_0 : i32, i32
  }
  func.func @transform_3(%arg0: i32) -> (i32, i32, i32) {
    %c0_i32 = arith.constant 0 : i32
    %c0_i32_0 = arith.constant 0 : i32
    %c0_i32_1 = arith.constant 0 : i32
    %c0_i32_2 = arith.constant 0 : i32
    return %c0_i32, %c0_i32_0, %c0_i32_1 : i32, i32, i32
  }
  func.func @transform_4(%arg0: i32) -> (i32, i32, i32) {
    %c0_i32 = arith.constant 0 : i32
    %c0_i32_0 = arith.constant 0 : i32
    %c0_i32_1 = arith.constant 0 : i32
    %c0_i32_2 = arith.constant 0 : i32
    return %c0_i32, %c0_i32_0, %c0_i32_1 : i32, i32, i32
  }
  func.func @transform_5(%arg0: i32) -> (i32, i32) {
    %c0_i32 = arith.constant 0 : i32
    %c0_i32_0 = arith.constant 0 : i32
    %c0_i32_1 = arith.constant 0 : i32
    return %c0_i32, %c0_i32_0 : i32, i32
  }
  func.func @transform_6(%arg0: i32) -> (i32, i32) {
    %c0_i32 = arith.constant 0 : i32
    %c0_i32_0 = arith.constant 0 : i32
    %c0_i32_1 = arith.constant 0 : i32
    return %c0_i32, %c0_i32_0 : i32, i32
  }
  func.func @transform_7(%arg0: i32) -> (i32, i32, i32) {
    %c0_i32 = arith.constant 0 : i32
    %c0_i32_0 = arith.constant 0 : i32
    %c0_i32_1 = arith.constant 0 : i32
    return %arg0, %c0_i32, %c0_i32_0 : i32, i32, i32
  }
}

</mosaic_0001>

<llo_original>
// kernel: vit_forward.1
$region0: #{vit_forward.1}
  #allocation0 [shape = 'u32[]', space=smem, size = 0x4, offset = 0x4, fixed_abs, tag = 'smem constant byte address 0x4 - core index']
  #allocation1 [shape = 'u32[144,128]{1,0:T(1,128)}', space=vmem, size = 0x12000, scoped, tag = 'internal scratch']
  %s0 = inlined_call_operand.vmem [shape: f32[2,4,192], index: 0, kind: input, shape index: {}]
  %s1 = inlined_call_operand.vmem [shape: bf16[192,32], index: 1, kind: input, shape index: {}]
  %s2 = inlined_call_operand.vmem [shape: f32[9,32], index: 2, kind: input, shape index: {}]
  %s3 = inlined_call_operand.vmem [shape: bf16[2,160,96], index: 3, kind: input, shape index: {}]
  %s4 = inlined_call_operand.vmem [shape: f32[2,8,64], index: 4, kind: input, shape index: {}]
  %s5 = inlined_call_operand.vmem [shape: bf16[32,128], index: 5, kind: input, shape index: {}]
  %s6 = inlined_call_operand.vmem [shape: f32[1,128], index: 6, kind: input, shape index: {}]
  %s7 = inlined_call_operand.hbm [shape: f32[2,1,128], index: 7, kind: output, shape index: {}]
  %s8 = sld [smem:[#allocation0]]
  $region61: #{vit_forward.1} parent=0
    _
  %s10 = ssub.s32 1, %s8
  %s11 = scalar_select 0, %s10, %s8
  $region1: #{vit_forward.1} parent=0
    #allocation2 [shape = 'u8[1024]{0}', space=vmem, size = 0x400, scoped, tag = 'output window, operand 0']
    #allocation3 [shape = 's32[2]{0}', space=sflag, size = 0x8, scoped, tag = 'scoped memory for vit_forward.1']
    %12 = vsyncpa [#allocation3], 0
    %s13 = scalar_lea.sflag [#allocation3], 1
    %14 = vsyncpa %s13, 0
    loop: start=0, step=1, limit=4
    $region2: #{vit_forward.1} parent=1 // loop_pre_header
      _
    $region3: #{vit_forward.1} parent=1 // loop_header
      %s16 = sphi 0, %s20
      %p17 = scmp.ge.s32.totalorder %s16, 4
      %s26 = sphi 0, %s28
      %s29 = sphi 0, %s26
      %s30 = sphi 0, %s29
      %s46 = sphi 0, %s30
      %s50 = sphi 0, %s50
      %s52 = sphi 0, %s50
      %s53 = sphi 0, %s52
      %s67 = sphi 0, %s53
      %s71 = sphi 0, %s71
      %s73 = sphi 0, %s71
      %s74 = sphi 0, %s73
      %s88 = sphi 0, %s74
      %s92 = sphi 0, %s92
      %s94 = sphi 0, %s92
      %s95 = sphi 0, %s94
      %s109 = sphi 0, %s95
      %s113 = sphi 0, %s113
      %s115 = sphi 0, %s113
      %s116 = sphi 0, %s115
      %s130 = sphi 0, %s116
      %s134 = sphi 0, %s134
      %s136 = sphi 0, %s134
      %s137 = sphi 0, %s136
      %s151 = sphi 0, %s137
      %s155 = sphi 0, %s155
      %s157 = sphi 0, %s155
      %s158 = sphi 0, %s157
      %s172 = sphi 0, %s158
      %s178 = sphi 0, %s180
      %s181 = sphi 0, %s178
      %s182 = sphi 0, %s181
      %s198 = sphi 0, %s182
    $region4: #{vit_forward.1} parent=1 // loop_header_branch
      %19 = sbr.rel (%p17) target = $region8
    $region5: #{vit_forward.1} parent=1 // loop_body
      %s21 = ssub.s32 %s16, 1
      %s22 = ssub.s32 %s16, 2
      %s23 = sadd.s32 %s16, 1
      %s24 = ssub.s32 %s16, %s23
      %p25 = scmp.eq.s32.totalorder %s24, 0
      %s27 = sadd.s32 %s26, 1
      %s28 = scalar_select %p25, %s26, %s27
      %p31 = pneg %p25
      %p32 = scmp.eq.s32.totalorder %s16, 1
      %p33 = por %p31, %p32
      %p34 = scmp.ne.s32.totalorder %s26, %s29
      %p35 = scmp.eq.s32.totalorder %s16, 0
      %p36 = por %p34, %p35
      %p37 = scmp.ne.s32.totalorder %s26, %s29
      %p38 = scmp.eq.s32.totalorder %s21, 1
      %p39 = por %p37, %p38
      %p40 = scmp.ne.s32.totalorder %s29, %s30
      %p41 = scmp.eq.s32.totalorder %s21, 0
      %p42 = por %p40, %p41
      %p43 = scmp.ne.s32.totalorder %s29, %s30
      %p44 = scmp.eq.s32.totalorder %s22, 1
      %p45 = por %p43, %p44
      %p47 = scmp.ne.s32.totalorder %s30, %s46
      %p48 = scmp.eq.s32.totalorder %s22, 0
      %p49 = por %p47, %p48
      %s51 = sadd.s32 %s50, 1
      %p54 = scmp.eq.s32.totalorder %s16, 1
      %p55 = scmp.ne.s32.totalorder %s50, %s52
      %p56 = scmp.eq.s32.totalorder %s16, 0
      %p57 = por %p55, %p56
      %p58 = scmp.ne.s32.totalorder %s50, %s52
      %p59 = scmp.eq.s32.totalorder %s21, 1
      %p60 = por %p58, %p59
      %p61 = scmp.ne.s32.totalorder %s52, %s53
      %p62 = scmp.eq.s32.totalorder %s21, 0
      %p63 = por %p61, %p62
      %p64 = scmp.ne.s32.totalorder %s52, %s53
      %p65 = scmp.eq.s32.totalorder %s22, 1
      %p66 = por %p64, %p65
      %p68 = scmp.ne.s32.totalorder %s53, %s67
      %p69 = scmp.eq.s32.totalorder %s22, 0
      %p70 = por %p68, %p69
      %s72 = sadd.s32 %s71, 1
      %p75 = scmp.eq.s32.totalorder %s16, 1
      %p76 = scmp.ne.s32.totalorder %s71, %s73
      %p77 = scmp.eq.s32.totalorder %s16, 0
      %p78 = por %p76, %p77
      %p79 = scmp.ne.s32.totalorder %s71, %s73
      %p80 = scmp.eq.s32.totalorder %s21, 1
      %p81 = por %p79, %p80
      %p82 = scmp.ne.s32.totalorder %s73, %s74
      %p83 = scmp.eq.s32.totalorder %s21, 0
      %p84 = por %p82, %p83
      %p85 = scmp.ne.s32.totalorder %s73, %s74
      %p86 = scmp.eq.s32.totalorder %s22, 1
      %p87 = por %p85, %p86
      %p89 = scmp.ne.s32.totalorder %s74, %s88
      %p90 = scmp.eq.s32.totalorder %s22, 0
      %p91 = por %p89, %p90
      %s93 = sadd.s32 %s92, 1
      %p96 = scmp.eq.s32.totalorder %s16, 1
      %p97 = scmp.ne.s32.totalorder %s92, %s94
      %p98 = scmp.eq.s32.totalorder %s16, 0
      %p99 = por %p97, %p98
      %p100 = scmp.ne.s32.totalorder %s92, %s94
      %p101 = scmp.eq.s32.totalorder %s21, 1
      %p102 = por %p100, %p101
      %p103 = scmp.ne.s32.totalorder %s94, %s95
      %p104 = scmp.eq.s32.totalorder %s21, 0
      %p105 = por %p103, %p104
      %p106 = scmp.ne.s32.totalorder %s94, %s95
      %p107 = scmp.eq.s32.totalorder %s22, 1
      %p108 = por %p106, %p107
      %p110 = scmp.ne.s32.totalorder %s95, %s109
      %p111 = scmp.eq.s32.totalorder %s22, 0
      %p112 = por %p110, %p111
      %s114 = sadd.s32 %s113, 1
      %p117 = scmp.eq.s32.totalorder %s16, 1
      %p118 = scmp.ne.s32.totalorder %s113, %s115
      %p119 = scmp.eq.s32.totalorder %s16, 0
      %p120 = por %p118, %p119
      %p121 = scmp.ne.s32.totalorder %s113, %s115
      %p122 = scmp.eq.s32.totalorder %s21, 1
      %p123 = por %p121, %p122
      %p124 = scmp.ne.s32.totalorder %s115, %s116
      %p125 = scmp.eq.s32.totalorder %s21, 0
      %p126 = por %p124, %p125
      %p127 = scmp.ne.s32.totalorder %s115, %s116
      %p128 = scmp.eq.s32.totalorder %s22, 1
      %p129 = por %p127, %p128
      %p131 = scmp.ne.s32.totalorder %s116, %s130
      %p132 = scmp.eq.s32.totalorder %s22, 0
      %p133 = por %p131, %p132
      %s135 = sadd.s32 %s134, 1
      %p138 = scmp.eq.s32.totalorder %s16, 1
      %p139 = scmp.ne.s32.totalorder %s134, %s136
      %p140 = scmp.eq.s32.totalorder %s16, 0
      %p141 = por %p139, %p140
      %p142 = scmp.ne.s32.totalorder %s134, %s136
      %p143 = scmp.eq.s32.totalorder %s21, 1
      %p144 = por %p142, %p143
      %p145 = scmp.ne.s32.totalorder %s136, %s137
      %p146 = scmp.eq.s32.totalorder %s21, 0
      %p147 = por %p145, %p146
      %p148 = scmp.ne.s32.totalorder %s136, %s137
      %p149 = scmp.eq.s32.totalorder %s22, 1
      %p150 = por %p148, %p149
      %p152 = scmp.ne.s32.totalorder %s137, %s151
      %p153 = scmp.eq.s32.totalorder %s22, 0
      %p154 = por %p152, %p153
      %s156 = sadd.s32 %s155, 1
      %p159 = scmp.eq.s32.totalorder %s16, 1
      %p160 = scmp.ne.s32.totalorder %s155, %s157
      %p161 = scmp.eq.s32.totalorder %s16, 0
      %p162 = por %p160, %p161
      %p163 = scmp.ne.s32.totalorder %s155, %s157
      %p164 = scmp.eq.s32.totalorder %s21, 1
      %p165 = por %p163, %p164
      %p166 = scmp.ne.s32.totalorder %s157, %s158
      %p167 = scmp.eq.s32.totalorder %s21, 0
      %p168 = por %p166, %p167
      %p169 = scmp.ne.s32.totalorder %s157, %s158
      %p170 = scmp.eq.s32.totalorder %s22, 1
      %p171 = por %p169, %p170
      %p173 = scmp.ne.s32.totalorder %s158, %s172
      %p174 = scmp.eq.s32.totalorder %s22, 0
      %p175 = por %p173, %p174
      %s176 = ssub.s32 %s16, %s23
      %p177 = scmp.eq.s32.totalorder %s176, 0
      %s179 = sadd.s32 %s178, 1
      %s180 = scalar_select %p177, %s178, %s179
      %p183 = pneg %p177
      %p184 = scmp.eq.s32.totalorder %s16, 1
      %p185 = por %p183, %p184
      %p186 = scmp.ne.s32.totalorder %s178, %s181
      %p187 = scmp.eq.s32.totalorder %s16, 0
      %p188 = por %p186, %p187
      %p189 = scmp.ne.s32.totalorder %s178, %s181
      %p190 = scmp.eq.s32.totalorder %s21, 1
      %p191 = por %p189, %p190
      %p192 = scmp.ne.s32.totalorder %s181, %s182
      %p193 = scmp.eq.s32.totalorder %s21, 0
      %p194 = por %p192, %p193
      %p195 = scmp.ne.s32.totalorder %s181, %s182
      %p196 = scmp.eq.s32.totalorder %s22, 1
      %p197 = por %p195, %p196
      %p199 = scmp.ne.s32.totalorder %s182, %s198
      %p200 = scmp.eq.s32.totalorder %s22, 0
      %p201 = por %p199, %p200
      %p202 = scmp.le.s32.totalorder 1, %s16
      %p203 = scmp.lt.s32.totalorder %s16, 3
      %p204 = pnand %p202, %p203
      %p205 = pneg %p204
      // Predicated region
      $region9: #{vit_forward.1} parent=5 // pred_check
        _
      $region10: #{vit_forward.1} parent=5 // pred_check_branch
        %207 = sbr.rel (%p204) target = $region12
      $region11: #{vit_forward.1} parent=5 // pred_region
        %s208 = ssub.s32 %s16, 1
        // Predicated region
        $region13: #{vit_forward.1} parent=11 // pred_check
          %p209 = pneg %p63
        $region14: #{vit_forward.1} parent=11 // pred_check_branch
          %211 = sbr.rel (%p209) target = $region16
        $region15: #{vit_forward.1} parent=11 // pred_region
          _
        $region16: #{vit_forward.1} parent=11 // pred_fallthru
          _
        // Predicated region
        $region17: #{vit_forward.1} parent=11 // pred_check
          %p212 = pneg %p84
        $region18: #{vit_forward.1} parent=11 // pred_check_branch
          %214 = sbr.rel (%p212) target = $region20
        $region19: #{vit_forward.1} parent=11 // pred_region
          _
        $region20: #{vit_forward.1} parent=11 // pred_fallthru
          _
        // Predicated region
        $region21: #{vit_forward.1} parent=11 // pred_check
          %p215 = pneg %p105
        $region22: #{vit_forward.1} parent=11 // pred_check_branch
          %217 = sbr.rel (%p215) target = $region24
        $region23: #{vit_forward.1} parent=11 // pred_region
          _
        $region24: #{vit_forward.1} parent=11 // pred_fallthru
          _
        // Predicated region
        $region25: #{vit_forward.1} parent=11 // pred_check
          %p218 = pneg %p126
        $region26: #{vit_forward.1} parent=11 // pred_check_branch
          %220 = sbr.rel (%p218) target = $region28
        $region27: #{vit_forward.1} parent=11 // pred_region
          _
        $region28: #{vit_forward.1} parent=11 // pred_fallthru
          _
        // Predicated region
        $region29: #{vit_forward.1} parent=11 // pred_check
          %p221 = pneg %p147
        $region30: #{vit_forward.1} parent=11 // pred_check_branch
          %223 = sbr.rel (%p221) target = $region32
        $region31: #{vit_forward.1} parent=11 // pred_region
          _
        $region32: #{vit_forward.1} parent=11 // pred_fallthru
          _
        // Predicated region
        $region33: #{vit_forward.1} parent=11 // pred_check
          %p224 = pneg %p168
        $region34: #{vit_forward.1} parent=11 // pred_check_branch
          %226 = sbr.rel (%p224) target = $region36
        $region35: #{vit_forward.1} parent=11 // pred_region
          _
        $region36: #{vit_forward.1} parent=11 // pred_fallthru
          _
      $region12: #{vit_forward.1} parent=5 // pred_fallthru
        _
      %p227 = scmp.lt.s32.totalorder %s16, 2
      // Predicated region
      $region37: #{vit_forward.1} parent=5 // pred_check
        %p228 = pneg %p227
      $region38: #{vit_forward.1} parent=5 // pred_check_branch
        %230 = sbr.rel (%p228) target = $region40
      $region39: #{vit_forward.1} parent=5 // pred_region
        // Predicated region
        $region41: #{vit_forward.1} parent=39 // pred_check
          %p231 = pneg %p36
        $region42: #{vit_forward.1} parent=39 // pred_check_branch
          %233 = sbr.rel (%p231) target = $region44
        $region43: #{vit_forward.1} parent=39 // pred_region
          %p234 = scmp.lt.s32.totalorder %s16, 1
          %s235 = scalar_select %p234, %s16, 1
          %s236 = smul.addr %s235, 2
          %s237 = smul.addr %s236, 4
          %s238 = scalar_lea.vmem %s0, %s237
        $region44: #{vit_forward.1} parent=39 // pred_fallthru
          _
      $region40: #{vit_forward.1} parent=5 // pred_fallthru
        _
      %p239 = scmp.le.s32.totalorder 1, %s16
      %p240 = scmp.lt.s32.totalorder %s16, 3
      %p241 = pnand %p239, %p240
      %p242 = pneg %p241
      // Predicated region
      $region45: #{vit_forward.1} parent=5 // pred_check
        _
      $region46: #{vit_forward.1} parent=5 // pred_check_branch
        %244 = sbr.rel (%p241) target = $region48
      $region47: #{vit_forward.1} parent=5 // pred_region
        %s245 = ssub.s32 %s16, 1
        %p246 = scmp.lt.s32.totalorder %s21, 1
        %s247 = scalar_select %p246, %s21, 1
        %s248 = smul.addr %s247, 2
        %s249 = smul.addr %s248, 4
        %s250 = scalar_lea.vmem %s0, %s249
        %p251 = pneg %p42
        %p252 = pneg %p39
        %p253 = pneg %p63
        %p254 = pneg %p60
        %p255 = pneg %p84
        %p256 = pneg %p81
        %p257 = pneg %p105
        %p258 = pneg %p102
        %p259 = pneg %p126
        %p260 = pneg %p123
        %p261 = pneg %p147
        %p262 = pneg %p144
        %p263 = pneg %p168
        %p264 = pneg %p165
        %p265 = pneg %p194
        %p266 = pneg %p191
        %s267 = sand.u32 %s181, 1
        %s268 = scalar_lea.sflag [#allocation3], %s267
        %s269 = sand.u32 %s181, 1
        %s270 = scalar_lea.vmem [#allocation2], %s269
        %p271 = scmp.lt.s32.totalorder %s21, 1
        %s272 = scalar_select %p271, %s21, 1
        %s273 = smul.addr %s272, 2
        %s274 = smul.addr %s273, 4
        %s275 = scalar_lea.vmem %s0, %s274
        %v277 = vld [vmem:[%s2] sm:$0xff]
        %v278 = vld [vmem:[%s2 + $0x8] sm:$0x1]
        %v279 = vld [vmem:[%s275] sm:$0xff]
        %v281 = vcombine.high %v279, %v279
        %v283 = vpack.c.bf16 %v279, %v279
        %v284 = vpack.c.bf16 %v281, %v281
        %v285 = vld [vmem:[%s1] sm:$0xf]
        %v286 = vld [vmem:[%s1 + $0x4] sm:$0xf]
        %v287 = vld [vmem:[%s1 + $0x8] sm:$0xf]
        %v288 = vld [vmem:[%s1 + $0xc] sm:$0xf]
        %v289 = vld [vmem:[%s1 + $0x10] sm:$0xf]
        %v290 = vld [vmem:[%s1 + $0x14] sm:$0xf]
        %v291 = vld [vmem:[%s1 + $0x18] sm:$0xf]
        %v292 = vld [vmem:[%s1 + $0x1c] sm:$0xf]
        %v293 = vld [vmem:[%s1 + $0x20] sm:$0xf]
        %v294 = vld [vmem:[%s1 + $0x24] sm:$0xf]
        %v295 = vld [vmem:[%s1 + $0x28] sm:$0xf]
        %v296 = vld [vmem:[%s1 + $0x2c] sm:$0xf]
        %v297 = vld [vmem:[%s1 + $0x30] sm:$0xf]
        %v298 = vld [vmem:[%s1 + $0x34] sm:$0xf]
        %v299 = vld [vmem:[%s1 + $0x38] sm:$0xf]
        %v300 = vld [vmem:[%s1 + $0x3c] sm:$0xf]
        %v301 = vld [vmem:[%s1 + $0x40] sm:$0xf]
        %v302 = vld [vmem:[%s1 + $0x44] sm:$0xf]
        %v303 = vld [vmem:[%s1 + $0x48] sm:$0xf]
        %v304 = vld [vmem:[%s1 + $0x4c] sm:$0xf]
        %v305 = vld [vmem:[%s1 + $0x50] sm:$0xf]
        %v306 = vld [vmem:[%s1 + $0x54] sm:$0xf]
        %v307 = vld [vmem:[%s1 + $0x58] sm:$0xf]
        %v308 = vld [vmem:[%s1 + $0x5c] sm:$0xf]
        %v309 = vlaneseq
        %v310 = vshrl.u32 %v309, 7
        %v311 = vsub.s32 0, %v310
        %v312 = vrot.slane %v277, %v311
        %v337 = vunpack.c.l.b16 %v285
        %v338 = vunpack.c.l.b16 %v286
        %v339 = vunpack.c.l.b16 %v287
        %v340 = vunpack.c.l.b16 %v288
        %v341 = vunpack.c.l.b16 %v289
        %v342 = vunpack.c.l.b16 %v290
        %v343 = vunpack.c.l.b16 %v291
        %v344 = vunpack.c.l.b16 %v292
        %v345 = vunpack.c.l.b16 %v293
        %v346 = vunpack.c.l.b16 %v294
        %v347 = vunpack.c.l.b16 %v295
        %v348 = vunpack.c.l.b16 %v296
        %v349 = vunpack.c.l.b16 %v297
        %v350 = vunpack.c.l.b16 %v298
        %v351 = vunpack.c.l.b16 %v299
        %v352 = vunpack.c.l.b16 %v300
        %v353 = vunpack.c.l.b16 %v301
        %v354 = vunpack.c.l.b16 %v302
        %v355 = vunpack.c.l.b16 %v303
        %v356 = vunpack.c.l.b16 %v304
        %v357 = vunpack.c.l.b16 %v305
        %v358 = vunpack.c.l.b16 %v306
        %v359 = vunpack.c.l.b16 %v307
        %v360 = vunpack.c.l.b16 %v308
        %v361 = vpack.c.b16 %v338, %v337
        %v362 = vpack.c.b16 %v340, %v339
        %v363 = vpack.c.b16 %v342, %v341
        %v364 = vpack.c.b16 %v344, %v343
        %v365 = vpack.c.b16 %v346, %v345
        %v366 = vpack.c.b16 %v348, %v347
        %v367 = vpack.c.b16 %v350, %v349
        %v368 = vpack.c.b16 %v352, %v351
        %v369 = vpack.c.b16 %v354, %v353
        %v370 = vpack.c.b16 %v356, %v355
        %v371 = vpack.c.b16 %v358, %v357
        %v372 = vpack.c.b16 %v360, %v359
        %vm385 = vcmask 523264
        %v387 = vsel %vm385, %v284, 0
        %389 = vmatprep.subr.bf16.mxu0 0
        %390 = vmatpush1.bf16.msra.mxu0 %v368
        %391 = vmatprep.subr.bf16.mxu0 0
        %392 = vmatpush1.bf16.msra.mxu0 %v367
        %393 = vmatprep.subr.bf16.mxu0 0
        %394 = vmatpush1.bf16.msra.mxu0 %v366
        %395 = vmatprep.subr.bf16.mxu0 0
        %396 = vmatpush1.bf16.msra.mxu0 %v365
        %397 = vmatprep.subr.bf16.mxu0 0
        %398 = vmatpush1.bf16.msra.mxu0 %v364
        %399 = vmatprep.subr.bf16.mxu0 0
        %400 = vmatpush1.bf16.msra.mxu0 %v363
        %401 = vmatprep.subr.bf16.mxu0 0
        %402 = vmatpush1.bf16.msra.mxu0 %v362
        %403 = vmatprep.subr.bf16.mxu0 0
        %404 = vmatpush1.bf16.msra.mxu0 %v361
        %405 = vmatprep.subr.bf16.mxu0 0
        %406 = vmatpush2.bf16.msra.mxu0 0
        %407 = vmatprep.subr.bf16.mxu0 0
        %408 = vmatpush2.bf16.msra.mxu0 0
        %409 = vmatprep.subr.bf16.mxu0 0
        %410 = vmatpush2.bf16.msra.mxu0 0
        %411 = vmatprep.subr.bf16.mxu0 0
        %412 = vmatpush2.bf16.msra.mxu0 0
        %413 = vmatprep.subr.bf16.mxu0 0
        %414 = vmatpush2.bf16.msra.mxu0 %v372
        %415 = vmatprep.subr.bf16.mxu0 0
        %416 = vmatpush2.bf16.msra.mxu0 %v371
        %417 = vmatprep.subr.bf16.mxu0 0
        %418 = vmatpush2.bf16.msra.mxu0 %v370
        %419 = vmatprep.subr.bf16.mxu0 0
        %420 = vmatpush2.bf16.msra.mxu0 %v369
        %421 = vmatprep.mubr.bf16.mxu0 %v387
        %422 = vmatmul.mubr.bf16.gmra.mxu0 %v283
        %v423 = vpop.f32.mrf.mxu0
        %v424 = vadd.f32 %v312, %v423
        %v425 = vpop.f32.mrf.mxu0
        %v426 = vpop.f32.mrf.mxu0
        %v427 = vpop.f32.mrf.mxu0
        %428 = vdwg.mxu0
        %v430 = vrot.slane %v277, 1
        %v433 = vrot.slane %v424, 7
        %vm435 = vcmask 1040384
        %v436 = vsel %vm435, %v430, %v433
        %v437 = vrot.slane %v277, 2
        %v439 = vadd.f32 %v436, %v437
        %v440 = vld [vmem:[%s3] sm:$0xf]
        %v441 = vld [vmem:[%s3 + $0x4] sm:$0xf]
        %v442 = vld [vmem:[%s3 + $0x8] sm:$0xf]
        %v443 = vld [vmem:[%s3 + $0xc] sm:$0xf]
        %v444 = vld [vmem:[%s3 + $0x10] sm:$0xf]
        %v445 = vld [vmem:[%s3 + $0x14] sm:$0xf]
        %v446 = vld [vmem:[%s3 + $0x18] sm:$0xf]
        %v447 = vld [vmem:[%s3 + $0x1c] sm:$0xf]
        %v448 = vld [vmem:[%s3 + $0x20] sm:$0xf]
        %v449 = vld [vmem:[%s3 + $0x24] sm:$0xf]
        %v450 = vld [vmem:[%s3 + $0x28] sm:$0xf]
        %v451 = vld [vmem:[%s3 + $0x2c] sm:$0xf]
        %v452 = vld [vmem:[%s3 + $0x30] sm:$0xf]
        %v453 = vld [vmem:[%s3 + $0x34] sm:$0xf]
        %v454 = vld [vmem:[%s3 + $0x38] sm:$0xf]
        %v455 = vld [vmem:[%s3 + $0x3c] sm:$0xf]
        %v456 = vld [vmem:[%s3 + $0x40] sm:$0xf]
        %v457 = vld [vmem:[%s3 + $0x44] sm:$0xf]
        %v458 = vld [vmem:[%s3 + $0x48] sm:$0xf]
        %v459 = vld [vmem:[%s3 + $0x4c] sm:$0xf]
        %v460 = vld [vmem:[%s4] sm:$0xff]
        %vm461 = vcmask 258048
        %v462 = vsel %vm461, %v439, 0.0
        %463 = vadd.xlane.f32.xlu0 %v462
        %v464 = vpop.xlane.xlu0 %463
        %v465 = vrcp.pop 32.0
        %v466 = vmul.f32 %v464, %v465
        %v467 = vsub.f32 %v439, %v466
        %v468 = vmul.f32 %v467, %v467
        %v469 = vsel %vm461, %v468, 0.0
        %470 = vadd.xlane.f32.xlu0 %v469
        %v471 = vpop.xlane.xlu0 %470
        %v472 = vmul.f32 %v471, %v465
        %v473 = vadd.f32 %v472, 1e-05
        %v474 = vrsqrt.pop %v473
        %v475 = vmul.f32 %v467, %v474
        %v476 = vlaneseq
        %v477 = vshrl.u32 %v476, 7
        %v478 = vsub.s32 0, %v477
        %v479 = vrot.slane %v460, %v478
        %v480 = vmul.f32 %v475, %v479
        %v481 = vlaneseq
        %v482 = vshrl.u32 %v481, 7
        %v483 = vsub.s32 1, %v482
        %v484 = vrot.slane %v460, %v483
        %v485 = vadd.f32 %v480, %v484
        %v486 = vpack.c.bf16 %v485, %v485
        %v491 = vunpack.c.l.b16 %v440
        %v492 = vunpack.c.l.b16 %v441
        %v493 = vunpack.c.l.b16 %v442
        %v494 = vunpack.c.l.b16 %v443
        %v495 = vpack.c.b16 %v492, %v491
        %v496 = vpack.c.b16 %v494, %v493
        %vm499 = vcmask 261120
        %v501 = vsel %vm499, %v486, 0
        %503 = vmatprep.subr.bf16.mxu0 0
        %504 = vmatpush1.bf16.msra.mxu0 0
        %505 = vmatprep.subr.bf16.mxu0 0
        %506 = vmatpush1.bf16.msra.mxu0 0
        %507 = vmatprep.subr.bf16.mxu0 0
        %508 = vmatpush1.bf16.msra.mxu0 0
        %509 = vmatprep.subr.bf16.mxu0 0
        %510 = vmatpush1.bf16.msra.mxu0 0
        %511 = vmatprep.subr.bf16.mxu0 0
        %512 = vmatpush1.bf16.msra.mxu0 0
        %513 = vmatprep.subr.bf16.mxu0 0
        %514 = vmatpush1.bf16.msra.mxu0 0
        %515 = vmatprep.subr.bf16.mxu0 0
        %516 = vmatpush1.bf16.msra.mxu0 %v496
        %517 = vmatprep.subr.bf16.mxu0 0
        %518 = vmatpush1.bf16.msra.mxu0 %v495
        %519 = vmatprep.subr.bf16.mxu0 0
        %520 = vmatpush2.bf16.msra.mxu0 0
        %521 = vmatprep.subr.bf16.mxu0 0
        %522 = vmatpush2.bf16.msra.mxu0 0
        %523 = vmatprep.subr.bf16.mxu0 0
        %524 = vmatpush2.bf16.msra.mxu0 0
        %525 = vmatprep.subr.bf16.mxu0 0
        %526 = vmatpush2.bf16.msra.mxu0 0
        %527 = vmatprep.subr.bf16.mxu0 0
        %528 = vmatpush2.bf16.msra.mxu0 0
        %529 = vmatprep.subr.bf16.mxu0 0
        %530 = vmatpush2.bf16.msra.mxu0 0
        %531 = vmatprep.subr.bf16.mxu0 0
        %532 = vmatpush2.bf16.msra.mxu0 0
        %533 = vmatprep.subr.bf16.mxu0 0
        %534 = vmatpush2.bf16.msra.mxu0 0
        %535 = vmatprep.mubr.bf16.mxu0 0
        %536 = vmatmul.mubr.bf16.gmra.mxu0 %v501
        %v537 = vpop.f32.mrf.mxu0
        %v538 = vadd.f32 0.0, %v537
        %v539 = vpop.f32.mrf.mxu0
        %v540 = vpop.f32.mrf.mxu0
        %v541 = vpop.f32.mrf.mxu0
        %542 = vdwg.mxu0
        %v543 = vpack.c.bf16 %v538, %v538
        %545 = vrot.lane.b32.xlu0 %v543, 120
        %v546 = vpop.permute.xlu0 %545
        %vm547 = vcmask 64512
        %v549 = vsel %vm547, %v543, 0
        %v552 = vsel %vm547, %v546, 0
        %554 = vmatprep.subr.bf16.mxu0 0
        %555 = vmatpush1.bf16.xpose.msra.mxu0 0
        %556 = vmatprep.subr.bf16.mxu0 0
        %557 = vmatpush1.bf16.xpose.msra.mxu0 0
        %558 = vmatprep.subr.bf16.mxu0 0
        %559 = vmatpush1.bf16.xpose.msra.mxu0 0
        %560 = vmatprep.subr.bf16.mxu0 0
        %561 = vmatpush1.bf16.xpose.msra.mxu0 0
        %562 = vmatprep.subr.bf16.mxu0 0
        %563 = vmatpush1.bf16.xpose.msra.mxu0 0
        %564 = vmatprep.subr.bf16.mxu0 0
        %565 = vmatpush1.bf16.xpose.msra.mxu0 0
        %566 = vmatprep.subr.bf16.mxu0 0
        %567 = vmatpush1.bf16.xpose.msra.mxu0 0
        %568 = vmatprep.subr.bf16.mxu0 0
        %569 = vmatpush1.bf16.xpose.msra.mxu0 %v552
        %570 = vmatprep.subr.bf16.mxu0 0
        %571 = vmatpush2.bf16.xpose.msra.mxu0 0
        %572 = vmatprep.subr.bf16.mxu0 0
        %573 = vmatpush2.bf16.xpose.msra.mxu0 0
        %574 = vmatprep.subr.bf16.mxu0 0
        %575 = vmatpush2.bf16.xpose.msra.mxu0 0
        %576 = vmatprep.subr.bf16.mxu0 0
        %577 = vmatpush2.bf16.xpose.msra.mxu0 0
        %578 = vmatprep.subr.bf16.mxu0 0
        %579 = vmatpush2.bf16.xpose.msra.mxu0 0
        %580 = vmatprep.subr.bf16.mxu0 0
        %581 = vmatpush2.bf16.xpose.msra.mxu0 0
        %582 = vmatprep.subr.bf16.mxu0 0
        %583 = vmatpush2.bf16.xpose.msra.mxu0 0
        %584 = vmatprep.subr.bf16.mxu0 0
        %585 = vmatpush2.bf16.xpose.msra.mxu0 0
        %586 = vmatprep.mubr.bf16.mxu0 0
        %587 = vmatmul.mubr.bf16.gmra.mxu0 %v549
        %v588 = vpop.f32.mrf.mxu0
        %v589 = vadd.f32 0.0, %v588
        %v590 = vpop.f32.mrf.mxu0
        %v591 = vpop.f32.mrf.mxu0
        %v592 = vpop.f32.mrf.mxu0
        %593 = vdwg.mxu0
        %v594 = vmul.f32 %v589, 0.35355338
        %vm595 = vcmask 36864
        %v596 = vsel %vm595, %v594, -inf
        %597 = vmax.xlane.f32.xlu0 %v596
        %v598 = vpop.xlane.xlu0 %597
        %v599 = vsub.f32 %v594, %v598
        %v600 = vmul.f32 %v599, 1.442695
        %v601 = vpow.pop %v600
        %v602 = vsel %vm595, %v601, 0.0
        %603 = vadd.xlane.f32.xlu0 %v602
        %v604 = vpop.xlane.xlu0 %603
        %v605 = vrcp.pop %v604
        %v606 = vmul.f32 %v601, %v605
        %v607 = vpack.c.bf16 %v606, %v606
        %608 = vrot.lane.b32.xlu0 %v543, 112
        %v609 = vpop.permute.xlu0 %608
        %vm610 = vcmask 39936
        %v612 = vsel %vm610, %v607, 0
        %vm614 = vcmask 1041408
        %vm615 = vcmask 1042432
        %v616 = vsel %vm614, 4294967295, 65535
        %v617 = vsel %vm615, %v616, 0
        %v619 = vand.u32 %v609, %v617
        %621 = vmatprep.subr.bf16.mxu0 0
        %622 = vmatpush1.bf16.msra.mxu0 0
        %623 = vmatprep.subr.bf16.mxu0 0
        %624 = vmatpush1.bf16.msra.mxu0 0
        %625 = vmatprep.subr.bf16.mxu0 0
        %626 = vmatpush1.bf16.msra.mxu0 0
        %627 = vmatprep.subr.bf16.mxu0 0
        %628 = vmatpush1.bf16.msra.mxu0 0
        %629 = vmatprep.subr.bf16.mxu0 0
        %630 = vmatpush1.bf16.msra.mxu0 0
        %631 = vmatprep.subr.bf16.mxu0 0
        %632 = vmatpush1.bf16.msra.mxu0 0
        %633 = vmatprep.subr.bf16.mxu0 0
        %634 = vmatpush1.bf16.msra.mxu0 0
        %635 = vmatprep.subr.bf16.mxu0 0
        %636 = vmatpush1.bf16.msra.mxu0 %v619
        %637 = vmatprep.subr.bf16.mxu0 0
        %638 = vmatpush2.bf16.msra.mxu0 0
        %639 = vmatprep.subr.bf16.mxu0 0
        %640 = vmatpush2.bf16.msra.mxu0 0
        %641 = vmatprep.subr.bf16.mxu0 0
        %642 = vmatpush2.bf16.msra.mxu0 0
        %643 = vmatprep.subr.bf16.mxu0 0
        %644 = vmatpush2.bf16.msra.mxu0 0
        %645 = vmatprep.subr.bf16.mxu0 0
        %646 = vmatpush2.bf16.msra.mxu0 0
        %647 = vmatprep.subr.bf16.mxu0 0
        %648 = vmatpush2.bf16.msra.mxu0 0
        %649 = vmatprep.subr.bf16.mxu0 0
        %650 = vmatpush2.bf16.msra.mxu0 0
        %651 = vmatprep.subr.bf16.mxu0 0
        %652 = vmatpush2.bf16.msra.mxu0 0
        %653 = vmatprep.mubr.bf16.mxu0 0
        %654 = vmatmul.mubr.bf16.gmra.mxu0 %v612
        %v655 = vpop.f32.mrf.mxu0
        %v656 = vadd.f32 0.0, %v655
        %v657 = vpop.f32.mrf.mxu0
        %v658 = vpop.f32.mrf.mxu0
        %v659 = vpop.f32.mrf.mxu0
        %660 = vdwg.mxu0
        %661 = vrot.lane.b32.xlu0 %v543, 104
        %v662 = vpop.permute.xlu0 %661
        %663 = vrot.lane.b32.xlu0 %v543, 96
        %v664 = vpop.permute.xlu0 %663
        %v666 = vsel %vm547, %v662, 0
        %v669 = vsel %vm547, %v664, 0
        %671 = vmatprep.subr.bf16.mxu0 0
        %672 = vmatpush1.bf16.xpose.msra.mxu0 0
        %673 = vmatprep.subr.bf16.mxu0 0
        %674 = vmatpush1.bf16.xpose.msra.mxu0 0
        %675 = vmatprep.subr.bf16.mxu0 0
        %676 = vmatpush1.bf16.xpose.msra.mxu0 0
        %677 = vmatprep.subr.bf16.mxu0 0
        %678 = vmatpush1.bf16.xpose.msra.mxu0 0
        %679 = vmatprep.subr.bf16.mxu0 0
        %680 = vmatpush1.bf16.xpose.msra.mxu0 0
        %681 = vmatprep.subr.bf16.mxu0 0
        %682 = vmatpush1.bf16.xpose.msra.mxu0 0
        %683 = vmatprep.subr.bf16.mxu0 0
        %684 = vmatpush1.bf16.xpose.msra.mxu0 0
        %685 = vmatprep.subr.bf16.mxu0 0
        %686 = vmatpush1.bf16.xpose.msra.mxu0 %v669
        %687 = vmatprep.subr.bf16.mxu0 0
        %688 = vmatpush2.bf16.xpose.msra.mxu0 0
        %689 = vmatprep.subr.bf16.mxu0 0
        %690 = vmatpush2.bf16.xpose.msra.mxu0 0
        %691 = vmatprep.subr.bf16.mxu0 0
        %692 = vmatpush2.bf16.xpose.msra.mxu0 0
        %693 = vmatprep.subr.bf16.mxu0 0
        %694 = vmatpush2.bf16.xpose.msra.mxu0 0
        %695 = vmatprep.subr.bf16.mxu0 0
        %696 = vmatpush2.bf16.xpose.msra.mxu0 0
        %697 = vmatprep.subr.bf16.mxu0 0
        %698 = vmatpush2.bf16.xpose.msra.mxu0 0
        %699 = vmatprep.subr.bf16.mxu0 0
        %700 = vmatpush2.bf16.xpose.msra.mxu0 0
        %701 = vmatprep.subr.bf16.mxu0 0
        %702 = vmatpush2.bf16.xpose.msra.mxu0 0
        %703 = vmatprep.mubr.bf16.mxu0 0
        %704 = vmatmul.mubr.bf16.gmra.mxu0 %v666
        %v705 = vpop.f32.mrf.mxu0
        %v706 = vadd.f32 0.0, %v705
        %v707 = vpop.f32.mrf.mxu0
        %v708 = vpop.f32.mrf.mxu0
        %v709 = vpop.f32.mrf.mxu0
        %710 = vdwg.mxu0
        %v711 = vmul.f32 %v706, 0.35355338
        %v712 = vsel %vm595, %v711, -inf
        %713 = vmax.xlane.f32.xlu0 %v712
        %v714 = vpop.xlane.xlu0 %713
        %v715 = vsub.f32 %v711, %v714
        %v716 = vmul.f32 %v715, 1.442695
        %v717 = vpow.pop %v716
        %v718 = vsel %vm595, %v717, 0.0
        %719 = vadd.xlane.f32.xlu0 %v718
        %v720 = vpop.xlane.xlu0 %719
        %v721 = vrcp.pop %v720
        %v722 = vmul.f32 %v717, %v721
        %v723 = vpack.c.bf16 %v722, %v722
        %724 = vrot.lane.b32.xlu0 %v543, 88
        %v725 = vpop.permute.xlu0 %724
        %v727 = vsel %vm610, %v723, 0
        %v730 = vand.u32 %v725, %v617
        %732 = vmatprep.subr.bf16.mxu0 0
        %733 = vmatpush1.bf16.msra.mxu0 0
        %734 = vmatprep.subr.bf16.mxu0 0
        %735 = vmatpush1.bf16.msra.mxu0 0
        %736 = vmatprep.subr.bf16.mxu0 0
        %737 = vmatpush1.bf16.msra.mxu0 0
        %738 = vmatprep.subr.bf16.mxu0 0
        %739 = vmatpush1.bf16.msra.mxu0 0
        %740 = vmatprep.subr.bf16.mxu0 0
        %741 = vmatpush1.bf16.msra.mxu0 0
        %742 = vmatprep.subr.bf16.mxu0 0
        %743 = vmatpush1.bf16.msra.mxu0 0
        %744 = vmatprep.subr.bf16.mxu0 0
        %745 = vmatpush1.bf16.msra.mxu0 0
        %746 = vmatprep.subr.bf16.mxu0 0
        %747 = vmatpush1.bf16.msra.mxu0 %v730
        %748 = vmatprep.subr.bf16.mxu0 0
        %749 = vmatpush2.bf16.msra.mxu0 0
        %750 = vmatprep.subr.bf16.mxu0 0
        %751 = vmatpush2.bf16.msra.mxu0 0
        %752 = vmatprep.subr.bf16.mxu0 0
        %753 = vmatpush2.bf16.msra.mxu0 0
        %754 = vmatprep.subr.bf16.mxu0 0
        %755 = vmatpush2.bf16.msra.mxu0 0
        %756 = vmatprep.subr.bf16.mxu0 0
        %757 = vmatpush2.bf16.msra.mxu0 0
        %758 = vmatprep.subr.bf16.mxu0 0
        %759 = vmatpush2.bf16.msra.mxu0 0
        %760 = vmatprep.subr.bf16.mxu0 0
        %761 = vmatpush2.bf16.msra.mxu0 0
        %762 = vmatprep.subr.bf16.mxu0 0
        %763 = vmatpush2.bf16.msra.mxu0 0
        %764 = vmatprep.mubr.bf16.mxu0 0
        %765 = vmatmul.mubr.bf16.gmra.mxu0 %v727
        %v766 = vpop.f32.mrf.mxu0
        %v767 = vadd.f32 0.0, %v766
        %v768 = vpop.f32.mrf.mxu0
        %v769 = vpop.f32.mrf.mxu0
        %v770 = vpop.f32.mrf.mxu0
        %771 = vdwg.mxu0
        %772 = vrot.lane.b32.xlu0 %v543, 80
        %v773 = vpop.permute.xlu0 %772
        %774 = vrot.lane.b32.xlu0 %v543, 72
        %v775 = vpop.permute.xlu0 %774
        %v777 = vsel %vm547, %v773, 0
        %v780 = vsel %vm547, %v775, 0
        %782 = vmatprep.subr.bf16.mxu0 0
        %783 = vmatpush1.bf16.xpose.msra.mxu0 0
        %784 = vmatprep.subr.bf16.mxu0 0
        %785 = vmatpush1.bf16.xpose.msra.mxu0 0
        %786 = vmatprep.subr.bf16.mxu0 0
        %787 = vmatpush1.bf16.xpose.msra.mxu0 0
        %788 = vmatprep.subr.bf16.mxu0 0
        %789 = vmatpush1.bf16.xpose.msra.mxu0 0
        %790 = vmatprep.subr.bf16.mxu0 0
        %791 = vmatpush1.bf16.xpose.msra.mxu0 0
        %792 = vmatprep.subr.bf16.mxu0 0
        %793 = vmatpush1.bf16.xpose.msra.mxu0 0
        %794 = vmatprep.subr.bf16.mxu0 0
        %795 = vmatpush1.bf16.xpose.msra.mxu0 0
        %796 = vmatprep.subr.bf16.mxu0 0
        %797 = vmatpush1.bf16.xpose.msra.mxu0 %v780
        %798 = vmatprep.subr.bf16.mxu0 0
        %799 = vmatpush2.bf16.xpose.msra.mxu0 0
        %800 = vmatprep.subr.bf16.mxu0 0
        %801 = vmatpush2.bf16.xpose.msra.mxu0 0
        %802 = vmatprep.subr.bf16.mxu0 0
        %803 = vmatpush2.bf16.xpose.msra.mxu0 0
        %804 = vmatprep.subr.bf16.mxu0 0
        %805 = vmatpush2.bf16.xpose.msra.mxu0 0
        %806 = vmatprep.subr.bf16.mxu0 0
        %807 = vmatpush2.bf16.xpose.msra.mxu0 0
        %808 = vmatprep.subr.bf16.mxu0 0
        %809 = vmatpush2.bf16.xpose.msra.mxu0 0
        %810 = vmatprep.subr.bf16.mxu0 0
        %811 = vmatpush2.bf16.xpose.msra.mxu0 0
        %812 = vmatprep.subr.bf16.mxu0 0
        %813 = vmatpush2.bf16.xpose.msra.mxu0 0
        %814 = vmatprep.mubr.bf16.mxu0 0
        %815 = vmatmul.mubr.bf16.gmra.mxu0 %v777
        %v816 = vpop.f32.mrf.mxu0
        %v817 = vadd.f32 0.0, %v816
        %v818 = vpop.f32.mrf.mxu0
        %v819 = vpop.f32.mrf.mxu0
        %v820 = vpop.f32.mrf.mxu0
        %821 = vdwg.mxu0
        %v822 = vmul.f32 %v817, 0.35355338
        %v823 = vsel %vm595, %v822, -inf
        %824 = vmax.xlane.f32.xlu0 %v823
        %v825 = vpop.xlane.xlu0 %824
        %v826 = vsub.f32 %v822, %v825
        %v827 = vmul.f32 %v826, 1.442695
        %v828 = vpow.pop %v827
        %v829 = vsel %vm595, %v828, 0.0
        %830 = vadd.xlane.f32.xlu0 %v829
        %v831 = vpop.xlane.xlu0 %830
        %v832 = vrcp.pop %v831
        %v833 = vmul.f32 %v828, %v832
        %v834 = vpack.c.bf16 %v833, %v833
        %835 = vrot.lane.b32.xlu0 %v543, 64
        %v836 = vpop.permute.xlu0 %835
        %v838 = vsel %vm610, %v834, 0
        %v841 = vand.u32 %v836, %v617
        %843 = vmatprep.subr.bf16.mxu0 0
        %844 = vmatpush1.bf16.msra.mxu0 0
        %845 = vmatprep.subr.bf16.mxu0 0
        %846 = vmatpush1.bf16.msra.mxu0 0
        %847 = vmatprep.subr.bf16.mxu0 0
        %848 = vmatpush1.bf16.msra.mxu0 0
        %849 = vmatprep.subr.bf16.mxu0 0
        %850 = vmatpush1.bf16.msra.mxu0 0
        %851 = vmatprep.subr.bf16.mxu0 0
        %852 = vmatpush1.bf16.msra.mxu0 0
        %853 = vmatprep.subr.bf16.mxu0 0
        %854 = vmatpush1.bf16.msra.mxu0 0
        %855 = vmatprep.subr.bf16.mxu0 0
        %856 = vmatpush1.bf16.msra.mxu0 0
        %857 = vmatprep.subr.bf16.mxu0 0
        %858 = vmatpush1.bf16.msra.mxu0 %v841
        %859 = vmatprep.subr.bf16.mxu0 0
        %860 = vmatpush2.bf16.msra.mxu0 0
        %861 = vmatprep.subr.bf16.mxu0 0
        %862 = vmatpush2.bf16.msra.mxu0 0
        %863 = vmatprep.subr.bf16.mxu0 0
        %864 = vmatpush2.bf16.msra.mxu0 0
        %865 = vmatprep.subr.bf16.mxu0 0
        %866 = vmatpush2.bf16.msra.mxu0 0
        %867 = vmatprep.subr.bf16.mxu0 0
        %868 = vmatpush2.bf16.msra.mxu0 0
        %869 = vmatprep.subr.bf16.mxu0 0
        %870 = vmatpush2.bf16.msra.mxu0 0
        %871 = vmatprep.subr.bf16.mxu0 0
        %872 = vmatpush2.bf16.msra.mxu0 0
        %873 = vmatprep.subr.bf16.mxu0 0
        %874 = vmatpush2.bf16.msra.mxu0 0
        %875 = vmatprep.mubr.bf16.mxu0 0
        %876 = vmatmul.mubr.bf16.gmra.mxu0 %v838
        %v877 = vpop.f32.mrf.mxu0
        %v878 = vadd.f32 0.0, %v877
        %v879 = vpop.f32.mrf.mxu0
        %v880 = vpop.f32.mrf.mxu0
        %v881 = vpop.f32.mrf.mxu0
        %882 = vdwg.mxu0
        %883 = vrot.lane.b32.xlu0 %v543, 56
        %v884 = vpop.permute.xlu0 %883
        %885 = vrot.lane.b32.xlu0 %v543, 48
        %v886 = vpop.permute.xlu0 %885
        %v888 = vsel %vm547, %v884, 0
        %v891 = vsel %vm547, %v886, 0
        %893 = vmatprep.subr.bf16.mxu0 0
        %894 = vmatpush1.bf16.xpose.msra.mxu0 0
        %895 = vmatprep.subr.bf16.mxu0 0
        %896 = vmatpush1.bf16.xpose.msra.mxu0 0
        %897 = vmatprep.subr.bf16.mxu0 0
        %898 = vmatpush1.bf16.xpose.msra.mxu0 0
        %899 = vmatprep.subr.bf16.mxu0 0
        %900 = vmatpush1.bf16.xpose.msra.mxu0 0
        %901 = vmatprep.subr.bf16.mxu0 0
        %902 = vmatpush1.bf16.xpose.msra.mxu0 0
        %903 = vmatprep.subr.bf16.mxu0 0
        %904 = vmatpush1.bf16.xpose.msra.mxu0 0
        %905 = vmatprep.subr.bf16.mxu0 0
        %906 = vmatpush1.bf16.xpose.msra.mxu0 0
        %907 = vmatprep.subr.bf16.mxu0 0
        %908 = vmatpush1.bf16.xpose.msra.mxu0 %v891
        %909 = vmatprep.subr.bf16.mxu0 0
        %910 = vmatpush2.bf16.xpose.msra.mxu0 0
        %911 = vmatprep.subr.bf16.mxu0 0
        %912 = vmatpush2.bf16.xpose.msra.mxu0 0
        %913 = vmatprep.subr.bf16.mxu0 0
        %914 = vmatpush2.bf16.xpose.msra.mxu0 0
        %915 = vmatprep.subr.bf16.mxu0 0
        %916 = vmatpush2.bf16.xpose.msra.mxu0 0
        %917 = vmatprep.subr.bf16.mxu0 0
        %918 = vmatpush2.bf16.xpose.msra.mxu0 0
        %919 = vmatprep.subr.bf16.mxu0 0
        %920 = vmatpush2.bf16.xpose.msra.mxu0 0
        %921 = vmatprep.subr.bf16.mxu0 0
        %922 = vmatpush2.bf16.xpose.msra.mxu0 0
        %923 = vmatprep.subr.bf16.mxu0 0
        %924 = vmatpush2.bf16.xpose.msra.mxu0 0
        %925 = vmatprep.mubr.bf16.mxu0 0
        %926 = vmatmul.mubr.bf16.gmra.mxu0 %v888
        %v927 = vpop.f32.mrf.mxu0
        %v928 = vadd.f32 0.0, %v927
        %v929 = vpop.f32.mrf.mxu0
        %v930 = vpop.f32.mrf.mxu0
        %v931 = vpop.f32.mrf.mxu0
        %932 = vdwg.mxu0
        %v933 = vmul.f32 %v928, 0.35355338
        %v934 = vsel %vm595, %v933, -inf
        %935 = vmax.xlane.f32.xlu0 %v934
        %v936 = vpop.xlane.xlu0 %935
        %v937 = vsub.f32 %v933, %v936
        %v938 = vmul.f32 %v937, 1.442695
        %v939 = vpow.pop %v938
        %v940 = vsel %vm595, %v939, 0.0
        %941 = vadd.xlane.f32.xlu0 %v940
        %v942 = vpop.xlane.xlu0 %941
        %v943 = vrcp.pop %v942
        %v944 = vmul.f32 %v939, %v943
        %v945 = vpack.c.bf16 %v944, %v944
        %946 = vrot.lane.b32.xlu0 %v543, 40
        %v947 = vpop.permute.xlu0 %946
        %v949 = vsel %vm610, %v945, 0
        %v952 = vand.u32 %v947, %v617
        %954 = vmatprep.subr.bf16.mxu0 0
        %955 = vmatpush1.bf16.msra.mxu0 0
        %956 = vmatprep.subr.bf16.mxu0 0
        %957 = vmatpush1.bf16.msra.mxu0 0
        %958 = vmatprep.subr.bf16.mxu0 0
        %959 = vmatpush1.bf16.msra.mxu0 0
        %960 = vmatprep.subr.bf16.mxu0 0
        %961 = vmatpush1.bf16.msra.mxu0 0
        %962 = vmatprep.subr.bf16.mxu0 0
        %963 = vmatpush1.bf16.msra.mxu0 0
        %964 = vmatprep.subr.bf16.mxu0 0
        %965 = vmatpush1.bf16.msra.mxu0 0
        %966 = vmatprep.subr.bf16.mxu0 0
        %967 = vmatpush1.bf16.msra.mxu0 0
        %968 = vmatprep.subr.bf16.mxu0 0
        %969 = vmatpush1.bf16.msra.mxu0 %v952
        %970 = vmatprep.subr.bf16.mxu0 0
        %971 = vmatpush2.bf16.msra.mxu0 0
        %972 = vmatprep.subr.bf16.mxu0 0
        %973 = vmatpush2.bf16.msra.mxu0 0
        %974 = vmatprep.subr.bf16.mxu0 0
        %975 = vmatpush2.bf16.msra.mxu0 0
        %976 = vmatprep.subr.bf16.mxu0 0
        %977 = vmatpush2.bf16.msra.mxu0 0
        %978 = vmatprep.subr.bf16.mxu0 0
        %979 = vmatpush2.bf16.msra.mxu0 0
        %980 = vmatprep.subr.bf16.mxu0 0
        %981 = vmatpush2.bf16.msra.mxu0 0
        %982 = vmatprep.subr.bf16.mxu0 0
        %983 = vmatpush2.bf16.msra.mxu0 0
        %984 = vmatprep.subr.bf16.mxu0 0
        %985 = vmatpush2.bf16.msra.mxu0 0
        %986 = vmatprep.mubr.bf16.mxu0 0
        %987 = vmatmul.mubr.bf16.gmra.mxu0 %v949
        %v988 = vpop.f32.mrf.mxu0
        %v989 = vadd.f32 0.0, %v988
        %v990 = vpop.f32.mrf.mxu0
        %v991 = vpop.f32.mrf.mxu0
        %v992 = vpop.f32.mrf.mxu0
        %993 = vdwg.mxu0
        %995 = vrot.lane.b32.xlu0 %v767, 8
        %v996 = vpop.permute.xlu0 %995
        %999 = vrot.lane.b32.xlu0 %v878, 16
        %v1000 = vpop.permute.xlu0 %999
        %1003 = vrot.lane.b32.xlu0 %v989, 24
        %v1004 = vpop.permute.xlu0 %1003
        %v1006 = vsel %vm547, %v656, %v996
        %vm1007 = vcmask 130048
        %v1008 = vsel %vm1007, %v1006, %v1000
        %vm1009 = vcmask 195584
        %v1010 = vsel %vm1009, %v1008, %v1004
        %v1011 = vpack.c.bf16 %v1010, %v1010
        %v1012 = vlaneseq
        %v1013 = vshrl.u32 %v1012, 7
        %v1014 = vsub.s32 2, %v1013
        %v1015 = vrot.slane %v460, %v1014
        %v1020 = vunpack.c.l.b16 %v444
        %v1021 = vunpack.c.l.b16 %v445
        %v1022 = vunpack.c.l.b16 %v446
        %v1023 = vunpack.c.l.b16 %v447
        %v1024 = vpack.c.b16 %v1021, %v1020
        %v1025 = vpack.c.b16 %v1023, %v1022
        %v1029 = vsel %vm499, %v1011, 0
        %1031 = vmatprep.subr.bf16.mxu0 0
        %1032 = vmatpush1.bf16.msra.mxu0 0
        %1033 = vmatprep.subr.bf16.mxu0 0
        %1034 = vmatpush1.bf16.msra.mxu0 0
        %1035 = vmatprep.subr.bf16.mxu0 0
        %1036 = vmatpush1.bf16.msra.mxu0 0
        %1037 = vmatprep.subr.bf16.mxu0 0
        %1038 = vmatpush1.bf16.msra.mxu0 0
        %1039 = vmatprep.subr.bf16.mxu0 0
        %1040 = vmatpush1.bf16.msra.mxu0 0
        %1041 = vmatprep.subr.bf16.mxu0 0
        %1042 = vmatpush1.bf16.msra.mxu0 0
        %1043 = vmatprep.subr.bf16.mxu0 0
        %1044 = vmatpush1.bf16.msra.mxu0 %v1025
        %1045 = vmatprep.subr.bf16.mxu0 0
        %1046 = vmatpush1.bf16.msra.mxu0 %v1024
        %1047 = vmatprep.subr.bf16.mxu0 0
        %1048 = vmatpush2.bf16.msra.mxu0 0
        %1049 = vmatprep.subr.bf16.mxu0 0
        %1050 = vmatpush2.bf16.msra.mxu0 0
        %1051 = vmatprep.subr.bf16.mxu0 0
        %1052 = vmatpush2.bf16.msra.mxu0 0
        %1053 = vmatprep.subr.bf16.mxu0 0
        %1054 = vmatpush2.bf16.msra.mxu0 0
        %1055 = vmatprep.subr.bf16.mxu0 0
        %1056 = vmatpush2.bf16.msra.mxu0 0
        %1057 = vmatprep.subr.bf16.mxu0 0
        %1058 = vmatpush2.bf16.msra.mxu0 0
        %1059 = vmatprep.subr.bf16.mxu0 0
        %1060 = vmatpush2.bf16.msra.mxu0 0
        %1061 = vmatprep.subr.bf16.mxu0 0
        %1062 = vmatpush2.bf16.msra.mxu0 0
        %1063 = vmatprep.mubr.bf16.mxu0 0
        %1064 = vmatmul.mubr.bf16.gmra.mxu0 %v1029
        %v1065 = vpop.f32.mrf.mxu0
        %v1066 = vadd.f32 %v1015, %v1065
        %v1067 = vpop.f32.mrf.mxu0
        %v1068 = vpop.f32.mrf.mxu0
        %v1069 = vpop.f32.mrf.mxu0
        %1070 = vdwg.mxu0
        %v1071 = vadd.f32 %v439, %v1066
        %v1072 = vsel %vm461, %v1071, 0.0
        %1073 = vadd.xlane.f32.xlu0 %v1072
        %v1074 = vpop.xlane.xlu0 %1073
        %v1075 = vmul.f32 %v1074, %v465
        %v1076 = vsub.f32 %v1071, %v1075
        %v1077 = vmul.f32 %v1076, %v1076
        %v1078 = vsel %vm461, %v1077, 0.0
        %1079 = vadd.xlane.f32.xlu0 %v1078
        %v1080 = vpop.xlane.xlu0 %1079
        %v1081 = vmul.f32 %v1080, %v465
        %v1082 = vadd.f32 %v1081, 1e-05
        %v1083 = vrsqrt.pop %v1082
        %v1084 = vmul.f32 %v1076, %v1083
        %v1085 = vlaneseq
        %v1086 = vshrl.u32 %v1085, 7
        %v1087 = vsub.s32 3, %v1086
        %v1088 = vrot.slane %v460, %v1087
        %v1089 = vmul.f32 %v1084, %v1088
        %v1090 = vlaneseq
        %v1091 = vshrl.u32 %v1090, 7
        %v1092 = vsub.s32 4, %v1091
        %v1093 = vrot.slane %v460, %v1092
        %v1094 = vadd.f32 %v1089, %v1093
        %v1095 = vpack.c.bf16 %v1094, %v1094
        %v1096 = vlaneseq
        %v1097 = vshrl.u32 %v1096, 7
        %v1098 = vsub.s32 6, %v1097
        %v1099 = vrot.slane %v460, %v1098
        %v1104 = vunpack.c.l.b16 %v448
        %v1105 = vunpack.c.l.b16 %v449
        %v1106 = vunpack.c.l.b16 %v450
        %v1107 = vunpack.c.l.b16 %v451
        %v1108 = vpack.c.b16 %v1105, %v1104
        %v1109 = vpack.c.b16 %v1107, %v1106
        %v1113 = vsel %vm499, %v1095, 0
        %1115 = vmatprep.subr.bf16.mxu0 0
        %1116 = vmatpush1.bf16.msra.mxu0 0
        %1117 = vmatprep.subr.bf16.mxu0 0
        %1118 = vmatpush1.bf16.msra.mxu0 0
        %1119 = vmatprep.subr.bf16.mxu0 0
        %1120 = vmatpush1.bf16.msra.mxu0 0
        %1121 = vmatprep.subr.bf16.mxu0 0
        %1122 = vmatpush1.bf16.msra.mxu0 0
        %1123 = vmatprep.subr.bf16.mxu0 0
        %1124 = vmatpush1.bf16.msra.mxu0 0
        %1125 = vmatprep.subr.bf16.mxu0 0
        %1126 = vmatpush1.bf16.msra.mxu0 0
        %1127 = vmatprep.subr.bf16.mxu0 0
        %1128 = vmatpush1.bf16.msra.mxu0 %v1109
        %1129 = vmatprep.subr.bf16.mxu0 0
        %1130 = vmatpush1.bf16.msra.mxu0 %v1108
        %1131 = vmatprep.subr.bf16.mxu0 0
        %1132 = vmatpush2.bf16.msra.mxu0 0
        %1133 = vmatprep.subr.bf16.mxu0 0
        %1134 = vmatpush2.bf16.msra.mxu0 0
        %1135 = vmatprep.subr.bf16.mxu0 0
        %1136 = vmatpush2.bf16.msra.mxu0 0
        %1137 = vmatprep.subr.bf16.mxu0 0
        %1138 = vmatpush2.bf16.msra.mxu0 0
        %1139 = vmatprep.subr.bf16.mxu0 0
        %1140 = vmatpush2.bf16.msra.mxu0 0
        %1141 = vmatprep.subr.bf16.mxu0 0
        %1142 = vmatpush2.bf16.msra.mxu0 0
        %1143 = vmatprep.subr.bf16.mxu0 0
        %1144 = vmatpush2.bf16.msra.mxu0 0
        %1145 = vmatprep.subr.bf16.mxu0 0
        %1146 = vmatpush2.bf16.msra.mxu0 0
        %1147 = vmatprep.mubr.bf16.mxu0 0
        %1148 = vmatmul.mubr.bf16.gmra.mxu0 %v1113
        %v1149 = vpop.f32.mrf.mxu0
        %v1150 = vadd.f32 %v1099, %v1149
        %v1151 = vpop.f32.mrf.mxu0
        %v1152 = vpop.f32.mrf.mxu0
        %v1153 = vpop.f32.mrf.mxu0
        %1154 = vdwg.mxu0
        %v1155 = vmul.f32 %v1150, 0.5
        %v1156 = vmul.f32 %v1150, 0.70710677
        %v1157 = verf.f32.pop %v1156
        %v1158 = vadd.f32 %v1157, 1.0
        %v1159 = vmul.f32 %v1155, %v1158
        %v1160 = vpack.c.bf16 %v1159, %v1159
        %v1161 = vlaneseq
        %v1162 = vshrl.u32 %v1161, 7
        %v1163 = vsub.s32 5, %v1162
        %v1164 = vrot.slane %v460, %v1163
        %v1173 = vunpack.c.l.b16 %v452
        %v1174 = vunpack.c.l.b16 %v453
        %v1175 = vunpack.c.l.b16 %v454
        %v1176 = vunpack.c.l.b16 %v455
        %v1177 = vunpack.c.l.b16 %v456
        %v1178 = vunpack.c.l.b16 %v457
        %v1179 = vunpack.c.l.b16 %v458
        %v1180 = vunpack.c.l.b16 %v459
        %v1181 = vpack.c.b16 %v1174, %v1173
        %v1182 = vpack.c.b16 %v1176, %v1175
        %v1183 = vpack.c.b16 %v1178, %v1177
        %v1184 = vpack.c.b16 %v1180, %v1179
        %v1190 = vsel %vm385, %v1160, 0
        %1192 = vmatprep.subr.bf16.mxu0 0
        %1193 = vmatpush1.bf16.msra.mxu0 0
        %1194 = vmatprep.subr.bf16.mxu0 0
        %1195 = vmatpush1.bf16.msra.mxu0 0
        %1196 = vmatprep.subr.bf16.mxu0 0
        %1197 = vmatpush1.bf16.msra.mxu0 0
        %1198 = vmatprep.subr.bf16.mxu0 0
        %1199 = vmatpush1.bf16.msra.mxu0 0
        %1200 = vmatprep.subr.bf16.mxu0 0
        %1201 = vmatpush1.bf16.msra.mxu0 %v1184
        %1202 = vmatprep.subr.bf16.mxu0 0
        %1203 = vmatpush1.bf16.msra.mxu0 %v1183
        %1204 = vmatprep.subr.bf16.mxu0 0
        %1205 = vmatpush1.bf16.msra.mxu0 %v1182
        %1206 = vmatprep.subr.bf16.mxu0 0
        %1207 = vmatpush1.bf16.msra.mxu0 %v1181
        %1208 = vmatprep.subr.bf16.mxu0 0
        %1209 = vmatpush2.bf16.msra.mxu0 0
        %1210 = vmatprep.subr.bf16.mxu0 0
        %1211 = vmatpush2.bf16.msra.mxu0 0
        %1212 = vmatprep.subr.bf16.mxu0 0
        %1213 = vmatpush2.bf16.msra.mxu0 0
        %1214 = vmatprep.subr.bf16.mxu0 0
        %1215 = vmatpush2.bf16.msra.mxu0 0
        %1216 = vmatprep.subr.bf16.mxu0 0
        %1217 = vmatpush2.bf16.msra.mxu0 0
        %1218 = vmatprep.subr.bf16.mxu0 0
        %1219 = vmatpush2.bf16.msra.mxu0 0
        %1220 = vmatprep.subr.bf16.mxu0 0
        %1221 = vmatpush2.bf16.msra.mxu0 0
        %1222 = vmatprep.subr.bf16.mxu0 0
        %1223 = vmatpush2.bf16.msra.mxu0 0
        %1224 = vmatprep.mubr.bf16.mxu0 0
        %1225 = vmatmul.mubr.bf16.gmra.mxu0 %v1190
        %v1226 = vpop.f32.mrf.mxu0
        %v1227 = vadd.f32 %v1164, %v1226
        %v1228 = vpop.f32.mrf.mxu0
        %v1229 = vpop.f32.mrf.mxu0
        %v1230 = vpop.f32.mrf.mxu0
        %1231 = vdwg.mxu0
        %v1232 = vadd.f32 %v1071, %v1227
        %s1233 = scalar_lea.vmem %s3, 80
        %v1234 = vld [vmem:[%s1233] sm:$0xf]
        %v1235 = vld [vmem:[%s1233 + $0x4] sm:$0xf]
        %v1236 = vld [vmem:[%s1233 + $0x8] sm:$0xf]
        %v1237 = vld [vmem:[%s1233 + $0xc] sm:$0xf]
        %v1238 = vld [vmem:[%s1233 + $0x10] sm:$0xf]
        %v1239 = vld [vmem:[%s1233 + $0x14] sm:$0xf]
        %v1240 = vld [vmem:[%s1233 + $0x18] sm:$0xf]
        %v1241 = vld [vmem:[%s1233 + $0x1c] sm:$0xf]
        %v1242 = vld [vmem:[%s1233 + $0x20] sm:$0xf]
        %v1243 = vld [vmem:[%s1233 + $0x24] sm:$0xf]
        %v1244 = vld [vmem:[%s1233 + $0x28] sm:$0xf]
        %v1245 = vld [vmem:[%s1233 + $0x2c] sm:$0xf]
        %v1246 = vld [vmem:[%s1233 + $0x30] sm:$0xf]
        %v1247 = vld [vmem:[%s1233 + $0x34] sm:$0xf]
        %v1248 = vld [vmem:[%s1233 + $0x38] sm:$0xf]
        %v1249 = vld [vmem:[%s1233 + $0x3c] sm:$0xf]
        %v1250 = vld [vmem:[%s1233 + $0x40] sm:$0xf]
        %v1251 = vld [vmem:[%s1233 + $0x44] sm:$0xf]
        %v1252 = vld [vmem:[%s1233 + $0x48] sm:$0xf]
        %v1253 = vld [vmem:[%s1233 + $0x4c] sm:$0xf]
        %s1254 = scalar_lea.vmem %s4, 8
        %v1255 = vld [vmem:[%s1254] sm:$0xff]
        %v1256 = vsel %vm461, %v1232, 0.0
        %1257 = vadd.xlane.f32.xlu0 %v1256
        %v1258 = vpop.xlane.xlu0 %1257
        %v1259 = vmul.f32 %v1258, %v465
        %v1260 = vsub.f32 %v1232, %v1259
        %v1261 = vmul.f32 %v1260, %v1260
        %v1262 = vsel %vm461, %v1261, 0.0
        %1263 = vadd.xlane.f32.xlu0 %v1262
        %v1264 = vpop.xlane.xlu0 %1263
        %v1265 = vmul.f32 %v1264, %v465
        %v1266 = vadd.f32 %v1265, 1e-05
        %v1267 = vrsqrt.pop %v1266
        %v1268 = vmul.f32 %v1260, %v1267
        %v1269 = vlaneseq
        %v1270 = vshrl.u32 %v1269, 7
        %v1271 = vsub.s32 0, %v1270
        %v1272 = vrot.slane %v1255, %v1271
        %v1273 = vmul.f32 %v1268, %v1272
        %v1274 = vlaneseq
        %v1275 = vshrl.u32 %v1274, 7
        %v1276 = vsub.s32 1, %v1275
        %v1277 = vrot.slane %v1255, %v1276
        %v1278 = vadd.f32 %v1273, %v1277
        %v1279 = vpack.c.bf16 %v1278, %v1278
        %v1284 = vunpack.c.l.b16 %v1234
        %v1285 = vunpack.c.l.b16 %v1235
        %v1286 = vunpack.c.l.b16 %v1236
        %v1287 = vunpack.c.l.b16 %v1237
        %v1288 = vpack.c.b16 %v1285, %v1284
        %v1289 = vpack.c.b16 %v1287, %v1286
        %v1293 = vsel %vm499, %v1279, 0
        %1295 = vmatprep.subr.bf16.mxu0 0
        %1296 = vmatpush1.bf16.msra.mxu0 0
        %1297 = vmatprep.subr.bf16.mxu0 0
        %1298 = vmatpush1.bf16.msra.mxu0 0
        %1299 = vmatprep.subr.bf16.mxu0 0
        %1300 = vmatpush1.bf16.msra.mxu0 0
        %1301 = vmatprep.subr.bf16.mxu0 0
        %1302 = vmatpush1.bf16.msra.mxu0 0
        %1303 = vmatprep.subr.bf16.mxu0 0
        %1304 = vmatpush1.bf16.msra.mxu0 0
        %1305 = vmatprep.subr.bf16.mxu0 0
        %1306 = vmatpush1.bf16.msra.mxu0 0
        %1307 = vmatprep.subr.bf16.mxu0 0
        %1308 = vmatpush1.bf16.msra.mxu0 %v1289
        %1309 = vmatprep.subr.bf16.mxu0 0
        %1310 = vmatpush1.bf16.msra.mxu0 %v1288
        %1311 = vmatprep.subr.bf16.mxu0 0
        %1312 = vmatpush2.bf16.msra.mxu0 0
        %1313 = vmatprep.subr.bf16.mxu0 0
        %1314 = vmatpush2.bf16.msra.mxu0 0
        %1315 = vmatprep.subr.bf16.mxu0 0
        %1316 = vmatpush2.bf16.msra.mxu0 0
        %1317 = vmatprep.subr.bf16.mxu0 0
        %1318 = vmatpush2.bf16.msra.mxu0 0
        %1319 = vmatprep.subr.bf16.mxu0 0
        %1320 = vmatpush2.bf16.msra.mxu0 0
        %1321 = vmatprep.subr.bf16.mxu0 0
        %1322 = vmatpush2.bf16.msra.mxu0 0
        %1323 = vmatprep.subr.bf16.mxu0 0
        %1324 = vmatpush2.bf16.msra.mxu0 0
        %1325 = vmatprep.subr.bf16.mxu0 0
        %1326 = vmatpush2.bf16.msra.mxu0 0
        %1327 = vmatprep.mubr.bf16.mxu0 0
        %1328 = vmatmul.mubr.bf16.gmra.mxu0 %v1293
        %v1329 = vpop.f32.mrf.mxu0
        %v1330 = vadd.f32 0.0, %v1329
        %v1331 = vpop.f32.mrf.mxu0
        %v1332 = vpop.f32.mrf.mxu0
        %v1333 = vpop.f32.mrf.mxu0
        %1334 = vdwg.mxu0
        %v1335 = vpack.c.bf16 %v1330, %v1330
        %1337 = vrot.lane.b32.xlu0 %v1335, 120
        %v1338 = vpop.permute.xlu0 %1337
        %v1340 = vsel %vm547, %v1335, 0
        %v1343 = vsel %vm547, %v1338, 0
        %1345 = vmatprep.subr.bf16.mxu0 0
        %1346 = vmatpush1.bf16.xpose.msra.mxu0 0
        %1347 = vmatprep.subr.bf16.mxu0 0
        %1348 = vmatpush1.bf16.xpose.msra.mxu0 0
        %1349 = vmatprep.subr.bf16.mxu0 0
        %1350 = vmatpush1.bf16.xpose.msra.mxu0 0
        %1351 = vmatprep.subr.bf16.mxu0 0
        %1352 = vmatpush1.bf16.xpose.msra.mxu0 0
        %1353 = vmatprep.subr.bf16.mxu0 0
        %1354 = vmatpush1.bf16.xpose.msra.mxu0 0
        %1355 = vmatprep.subr.bf16.mxu0 0
        %1356 = vmatpush1.bf16.xpose.msra.mxu0 0
        %1357 = vmatprep.subr.bf16.mxu0 0
        %1358 = vmatpush1.bf16.xpose.msra.mxu0 0
        %1359 = vmatprep.subr.bf16.mxu0 0
        %1360 = vmatpush1.bf16.xpose.msra.mxu0 %v1343
        %1361 = vmatprep.subr.bf16.mxu0 0
        %1362 = vmatpush2.bf16.xpose.msra.mxu0 0
        %1363 = vmatprep.subr.bf16.mxu0 0
        %1364 = vmatpush2.bf16.xpose.msra.mxu0 0
        %1365 = vmatprep.subr.bf16.mxu0 0
        %1366 = vmatpush2.bf16.xpose.msra.mxu0 0
        %1367 = vmatprep.subr.bf16.mxu0 0
        %1368 = vmatpush2.bf16.xpose.msra.mxu0 0
        %1369 = vmatprep.subr.bf16.mxu0 0
        %1370 = vmatpush2.bf16.xpose.msra.mxu0 0
        %1371 = vmatprep.subr.bf16.mxu0 0
        %1372 = vmatpush2.bf16.xpose.msra.mxu0 0
        %1373 = vmatprep.subr.bf16.mxu0 0
        %1374 = vmatpush2.bf16.xpose.msra.mxu0 0
        %1375 = vmatprep.subr.bf16.mxu0 0
        %1376 = vmatpush2.bf16.xpose.msra.mxu0 0
        %1377 = vmatprep.mubr.bf16.mxu0 0
        %1378 = vmatmul.mubr.bf16.gmra.mxu0 %v1340
        %v1379 = vpop.f32.mrf.mxu0
        %v1380 = vadd.f32 0.0, %v1379
        %v1381 = vpop.f32.mrf.mxu0
        %v1382 = vpop.f32.mrf.mxu0
        %v1383 = vpop.f32.mrf.mxu0
        %1384 = vdwg.mxu0
        %v1385 = vmul.f32 %v1380, 0.35355338
        %v1386 = vsel %vm595, %v1385, -inf
        %1387 = vmax.xlane.f32.xlu0 %v1386
        %v1388 = vpop.xlane.xlu0 %1387
        %v1389 = vsub.f32 %v1385, %v1388
        %v1390 = vmul.f32 %v1389, 1.442695
        %v1391 = vpow.pop %v1390
        %v1392 = vsel %vm595, %v1391, 0.0
        %1393 = vadd.xlane.f32.xlu0 %v1392
        %v1394 = vpop.xlane.xlu0 %1393
        %v1395 = vrcp.pop %v1394
        %v1396 = vmul.f32 %v1391, %v1395
        %v1397 = vpack.c.bf16 %v1396, %v1396
        %1398 = vrot.lane.b32.xlu0 %v1335, 112
        %v1399 = vpop.permute.xlu0 %1398
        %v1401 = vsel %vm610, %v1397, 0
        %v1404 = vand.u32 %v1399, %v617
        %1406 = vmatprep.subr.bf16.mxu0 0
        %1407 = vmatpush1.bf16.msra.mxu0 0
        %1408 = vmatprep.subr.bf16.mxu0 0
        %1409 = vmatpush1.bf16.msra.mxu0 0
        %1410 = vmatprep.subr.bf16.mxu0 0
        %1411 = vmatpush1.bf16.msra.mxu0 0
        %1412 = vmatprep.subr.bf16.mxu0 0
        %1413 = vmatpush1.bf16.msra.mxu0 0
        %1414 = vmatprep.subr.bf16.mxu0 0
        %1415 = vmatpush1.bf16.msra.mxu0 0
        %1416 = vmatprep.subr.bf16.mxu0 0
        %1417 = vmatpush1.bf16.msra.mxu0 0
        %1418 = vmatprep.subr.bf16.mxu0 0
        %1419 = vmatpush1.bf16.msra.mxu0 0
        %1420 = vmatprep.subr.bf16.mxu0 0
        %1421 = vmatpush1.bf16.msra.mxu0 %v1404
        %1422 = vmatprep.subr.bf16.mxu0 0
        %1423 = vmatpush2.bf16.msra.mxu0 0
        %1424 = vmatprep.subr.bf16.mxu0 0
        %1425 = vmatpush2.bf16.msra.mxu0 0
        %1426 = vmatprep.subr.bf16.mxu0 0
        %1427 = vmatpush2.bf16.msra.mxu0 0
        %1428 = vmatprep.subr.bf16.mxu0 0
        %1429 = vmatpush2.bf16.msra.mxu0 0
        %1430 = vmatprep.subr.bf16.mxu0 0
        %1431 = vmatpush2.bf16.msra.mxu0 0
        %1432 = vmatprep.subr.bf16.mxu0 0
        %1433 = vmatpush2.bf16.msra.mxu0 0
        %1434 = vmatprep.subr.bf16.mxu0 0
        %1435 = vmatpush2.bf16.msra.mxu0 0
        %1436 = vmatprep.subr.bf16.mxu0 0
        %1437 = vmatpush2.bf16.msra.mxu0 0
        %1438 = vmatprep.mubr.bf16.mxu0 0
        %1439 = vmatmul.mubr.bf16.gmra.mxu0 %v1401
        %v1440 = vpop.f32.mrf.mxu0
        %v1441 = vadd.f32 0.0, %v1440
        %v1442 = vpop.f32.mrf.mxu0
        %v1443 = vpop.f32.mrf.mxu0
        %v1444 = vpop.f32.mrf.mxu0
        %1445 = vdwg.mxu0
        %1446 = vrot.lane.b32.xlu0 %v1335, 104
        %v1447 = vpop.permute.xlu0 %1446
        %1448 = vrot.lane.b32.xlu0 %v1335, 96
        %v1449 = vpop.permute.xlu0 %1448
        %v1451 = vsel %vm547, %v1447, 0
        %v1454 = vsel %vm547, %v1449, 0
        %1456 = vmatprep.subr.bf16.mxu0 0
        %1457 = vmatpush1.bf16.xpose.msra.mxu0 0
        %1458 = vmatprep.subr.bf16.mxu0 0
        %1459 = vmatpush1.bf16.xpose.msra.mxu0 0
        %1460 = vmatprep.subr.bf16.mxu0 0
        %1461 = vmatpush1.bf16.xpose.msra.mxu0 0
        %1462 = vmatprep.subr.bf16.mxu0 0
        %1463 = vmatpush1.bf16.xpose.msra.mxu0 0
        %1464 = vmatprep.subr.bf16.mxu0 0
        %1465 = vmatpush1.bf16.xpose.msra.mxu0 0
        %1466 = vmatprep.subr.bf16.mxu0 0
        %1467 = vmatpush1.bf16.xpose.msra.mxu0 0
        %1468 = vmatprep.subr.bf16.mxu0 0
        %1469 = vmatpush1.bf16.xpose.msra.mxu0 0
        %1470 = vmatprep.subr.bf16.mxu0 0
        %1471 = vmatpush1.bf16.xpose.msra.mxu0 %v1454
        %1472 = vmatprep.subr.bf16.mxu0 0
        %1473 = vmatpush2.bf16.xpose.msra.mxu0 0
        %1474 = vmatprep.subr.bf16.mxu0 0
        %1475 = vmatpush2.bf16.xpose.msra.mxu0 0
        %1476 = vmatprep.subr.bf16.mxu0 0
        %1477 = vmatpush2.bf16.xpose.msra.mxu0 0
        %1478 = vmatprep.subr.bf16.mxu0 0
        %1479 = vmatpush2.bf16.xpose.msra.mxu0 0
        %1480 = vmatprep.subr.bf16.mxu0 0
        %1481 = vmatpush2.bf16.xpose.msra.mxu0 0
        %1482 = vmatprep.subr.bf16.mxu0 0
        %1483 = vmatpush2.bf16.xpose.msra.mxu0 0
        %1484 = vmatprep.subr.bf16.mxu0 0
        %1485 = vmatpush2.bf16.xpose.msra.mxu0 0
        %1486 = vmatprep.subr.bf16.mxu0 0
        %1487 = vmatpush2.bf16.xpose.msra.mxu0 0
        %1488 = vmatprep.mubr.bf16.mxu0 0
        %1489 = vmatmul.mubr.bf16.gmra.mxu0 %v1451
        %v1490 = vpop.f32.mrf.mxu0
        %v1491 = vadd.f32 0.0, %v1490
        %v1492 = vpop.f32.mrf.mxu0
        %v1493 = vpop.f32.mrf.mxu0
        %v1494 = vpop.f32.mrf.mxu0
        %1495 = vdwg.mxu0
        %v1496 = vmul.f32 %v1491, 0.35355338
        %v1497 = vsel %vm595, %v1496, -inf
        %1498 = vmax.xlane.f32.xlu0 %v1497
        %v1499 = vpop.xlane.xlu0 %1498
        %v1500 = vsub.f32 %v1496, %v1499
        %v1501 = vmul.f32 %v1500, 1.442695
        %v1502 = vpow.pop %v1501
        %v1503 = vsel %vm595, %v1502, 0.0
        %1504 = vadd.xlane.f32.xlu0 %v1503
        %v1505 = vpop.xlane.xlu0 %1504
        %v1506 = vrcp.pop %v1505
        %v1507 = vmul.f32 %v1502, %v1506
        %v1508 = vpack.c.bf16 %v1507, %v1507
        %1509 = vrot.lane.b32.xlu0 %v1335, 88
        %v1510 = vpop.permute.xlu0 %1509
        %v1512 = vsel %vm610, %v1508, 0
        %v1515 = vand.u32 %v1510, %v617
        %1517 = vmatprep.subr.bf16.mxu0 0
        %1518 = vmatpush1.bf16.msra.mxu0 0
        %1519 = vmatprep.subr.bf16.mxu0 0
        %1520 = vmatpush1.bf16.msra.mxu0 0
        %1521 = vmatprep.subr.bf16.mxu0 0
        %1522 = vmatpush1.bf16.msra.mxu0 0
        %1523 = vmatprep.subr.bf16.mxu0 0
        %1524 = vmatpush1.bf16.msra.mxu0 0
        %1525 = vmatprep.subr.bf16.mxu0 0
        %1526 = vmatpush1.bf16.msra.mxu0 0
        %1527 = vmatprep.subr.bf16.mxu0 0
        %1528 = vmatpush1.bf16.msra.mxu0 0
        %1529 = vmatprep.subr.bf16.mxu0 0
        %1530 = vmatpush1.bf16.msra.mxu0 0
        %1531 = vmatprep.subr.bf16.mxu0 0
        %1532 = vmatpush1.bf16.msra.mxu0 %v1515
        %1533 = vmatprep.subr.bf16.mxu0 0
        %1534 = vmatpush2.bf16.msra.mxu0 0
        %1535 = vmatprep.subr.bf16.mxu0 0
        %1536 = vmatpush2.bf16.msra.mxu0 0
        %1537 = vmatprep.subr.bf16.mxu0 0
        %1538 = vmatpush2.bf16.msra.mxu0 0
        %1539 = vmatprep.subr.bf16.mxu0 0
        %1540 = vmatpush2.bf16.msra.mxu0 0
        %1541 = vmatprep.subr.bf16.mxu0 0
        %1542 = vmatpush2.bf16.msra.mxu0 0
        %1543 = vmatprep.subr.bf16.mxu0 0
        %1544 = vmatpush2.bf16.msra.mxu0 0
        %1545 = vmatprep.subr.bf16.mxu0 0
        %1546 = vmatpush2.bf16.msra.mxu0 0
        %1547 = vmatprep.subr.bf16.mxu0 0
        %1548 = vmatpush2.bf16.msra.mxu0 0
        %1549 = vmatprep.mubr.bf16.mxu0 0
        %1550 = vmatmul.mubr.bf16.gmra.mxu0 %v1512
        %v1551 = vpop.f32.mrf.mxu0
        %v1552 = vadd.f32 0.0, %v1551
        %v1553 = vpop.f32.mrf.mxu0
        %v1554 = vpop.f32.mrf.mxu0
        %v1555 = vpop.f32.mrf.mxu0
        %1556 = vdwg.mxu0
        %1557 = vrot.lane.b32.xlu0 %v1335, 80
        %v1558 = vpop.permute.xlu0 %1557
        %1559 = vrot.lane.b32.xlu0 %v1335, 72
        %v1560 = vpop.permute.xlu0 %1559
        %v1562 = vsel %vm547, %v1558, 0
        %v1565 = vsel %vm547, %v1560, 0
        %1567 = vmatprep.subr.bf16.mxu0 0
        %1568 = vmatpush1.bf16.xpose.msra.mxu0 0
        %1569 = vmatprep.subr.bf16.mxu0 0
        %1570 = vmatpush1.bf16.xpose.msra.mxu0 0
        %1571 = vmatprep.subr.bf16.mxu0 0
        %1572 = vmatpush1.bf16.xpose.msra.mxu0 0
        %1573 = vmatprep.subr.bf16.mxu0 0
        %1574 = vmatpush1.bf16.xpose.msra.mxu0 0
        %1575 = vmatprep.subr.bf16.mxu0 0
        %1576 = vmatpush1.bf16.xpose.msra.mxu0 0
        %1577 = vmatprep.subr.bf16.mxu0 0
        %1578 = vmatpush1.bf16.xpose.msra.mxu0 0
        %1579 = vmatprep.subr.bf16.mxu0 0
        %1580 = vmatpush1.bf16.xpose.msra.mxu0 0
        %1581 = vmatprep.subr.bf16.mxu0 0
        %1582 = vmatpush1.bf16.xpose.msra.mxu0 %v1565
        %1583 = vmatprep.subr.bf16.mxu0 0
        %1584 = vmatpush2.bf16.xpose.msra.mxu0 0
        %1585 = vmatprep.subr.bf16.mxu0 0
        %1586 = vmatpush2.bf16.xpose.msra.mxu0 0
        %1587 = vmatprep.subr.bf16.mxu0 0
        %1588 = vmatpush2.bf16.xpose.msra.mxu0 0
        %1589 = vmatprep.subr.bf16.mxu0 0
        %1590 = vmatpush2.bf16.xpose.msra.mxu0 0
        %1591 = vmatprep.subr.bf16.mxu0 0
        %1592 = vmatpush2.bf16.xpose.msra.mxu0 0
        %1593 = vmatprep.subr.bf16.mxu0 0
        %1594 = vmatpush2.bf16.xpose.msra.mxu0 0
        %1595 = vmatprep.subr.bf16.mxu0 0
        %1596 = vmatpush2.bf16.xpose.msra.mxu0 0
        %1597 = vmatprep.subr.bf16.mxu0 0
        %1598 = vmatpush2.bf16.xpose.msra.mxu0 0
        %1599 = vmatprep.mubr.bf16.mxu0 0
        %1600 = vmatmul.mubr.bf16.gmra.mxu0 %v1562
        %v1601 = vpop.f32.mrf.mxu0
        %v1602 = vadd.f32 0.0, %v1601
        %v1603 = vpop.f32.mrf.mxu0
        %v1604 = vpop.f32.mrf.mxu0
        %v1605 = vpop.f32.mrf.mxu0
        %1606 = vdwg.mxu0
        %v1607 = vmul.f32 %v1602, 0.35355338
        %v1608 = vsel %vm595, %v1607, -inf
        %1609 = vmax.xlane.f32.xlu0 %v1608
        %v1610 = vpop.xlane.xlu0 %1609
        %v1611 = vsub.f32 %v1607, %v1610
        %v1612 = vmul.f32 %v1611, 1.442695
        %v1613 = vpow.pop %v1612
        %v1614 = vsel %vm595, %v1613, 0.0
        %1615 = vadd.xlane.f32.xlu0 %v1614
        %v1616 = vpop.xlane.xlu0 %1615
        %v1617 = vrcp.pop %v1616
        %v1618 = vmul.f32 %v1613, %v1617
        %v1619 = vpack.c.bf16 %v1618, %v1618
        %1620 = vrot.lane.b32.xlu0 %v1335, 64
        %v1621 = vpop.permute.xlu0 %1620
        %v1623 = vsel %vm610, %v1619, 0
        %v1626 = vand.u32 %v1621, %v617
        %1628 = vmatprep.subr.bf16.mxu0 0
        %1629 = vmatpush1.bf16.msra.mxu0 0
        %1630 = vmatprep.subr.bf16.mxu0 0
        %1631 = vmatpush1.bf16.msra.mxu0 0
        %1632 = vmatprep.subr.bf16.mxu0 0
        %1633 = vmatpush1.bf16.msra.mxu0 0
        %1634 = vmatprep.subr.bf16.mxu0 0
        %1635 = vmatpush1.bf16.msra.mxu0 0
        %1636 = vmatprep.subr.bf16.mxu0 0
        %1637 = vmatpush1.bf16.msra.mxu0 0
        %1638 = vmatprep.subr.bf16.mxu0 0
        %1639 = vmatpush1.bf16.msra.mxu0 0
        %1640 = vmatprep.subr.bf16.mxu0 0
        %1641 = vmatpush1.bf16.msra.mxu0 0
        %1642 = vmatprep.subr.bf16.mxu0 0
        %1643 = vmatpush1.bf16.msra.mxu0 %v1626
        %1644 = vmatprep.subr.bf16.mxu0 0
        %1645 = vmatpush2.bf16.msra.mxu0 0
        %1646 = vmatprep.subr.bf16.mxu0 0
        %1647 = vmatpush2.bf16.msra.mxu0 0
        %1648 = vmatprep.subr.bf16.mxu0 0
        %1649 = vmatpush2.bf16.msra.mxu0 0
        %1650 = vmatprep.subr.bf16.mxu0 0
        %1651 = vmatpush2.bf16.msra.mxu0 0
        %1652 = vmatprep.subr.bf16.mxu0 0
        %1653 = vmatpush2.bf16.msra.mxu0 0
        %1654 = vmatprep.subr.bf16.mxu0 0
        %1655 = vmatpush2.bf16.msra.mxu0 0
        %1656 = vmatprep.subr.bf16.mxu0 0
        %1657 = vmatpush2.bf16.msra.mxu0 0
        %1658 = vmatprep.subr.bf16.mxu0 0
        %1659 = vmatpush2.bf16.msra.mxu0 0
        %1660 = vmatprep.mubr.bf16.mxu0 0
        %1661 = vmatmul.mubr.bf16.gmra.mxu0 %v1623
        %v1662 = vpop.f32.mrf.mxu0
        %v1663 = vadd.f32 0.0, %v1662
        %v1664 = vpop.f32.mrf.mxu0
        %v1665 = vpop.f32.mrf.mxu0
        %v1666 = vpop.f32.mrf.mxu0
        %1667 = vdwg.mxu0
        %1668 = vrot.lane.b32.xlu0 %v1335, 56
        %v1669 = vpop.permute.xlu0 %1668
        %1670 = vrot.lane.b32.xlu0 %v1335, 48
        %v1671 = vpop.permute.xlu0 %1670
        %v1673 = vsel %vm547, %v1669, 0
        %v1676 = vsel %vm547, %v1671, 0
        %1678 = vmatprep.subr.bf16.mxu0 0
        %1679 = vmatpush1.bf16.xpose.msra.mxu0 0
        %1680 = vmatprep.subr.bf16.mxu0 0
        %1681 = vmatpush1.bf16.xpose.msra.mxu0 0
        %1682 = vmatprep.subr.bf16.mxu0 0
        %1683 = vmatpush1.bf16.xpose.msra.mxu0 0
        %1684 = vmatprep.subr.bf16.mxu0 0
        %1685 = vmatpush1.bf16.xpose.msra.mxu0 0
        %1686 = vmatprep.subr.bf16.mxu0 0
        %1687 = vmatpush1.bf16.xpose.msra.mxu0 0
        %1688 = vmatprep.subr.bf16.mxu0 0
        %1689 = vmatpush1.bf16.xpose.msra.mxu0 0
        %1690 = vmatprep.subr.bf16.mxu0 0
        %1691 = vmatpush1.bf16.xpose.msra.mxu0 0
        %1692 = vmatprep.subr.bf16.mxu0 0
        %1693 = vmatpush1.bf16.xpose.msra.mxu0 %v1676
        %1694 = vmatprep.subr.bf16.mxu0 0
        %1695 = vmatpush2.bf16.xpose.msra.mxu0 0
        %1696 = vmatprep.subr.bf16.mxu0 0
        %1697 = vmatpush2.bf16.xpose.msra.mxu0 0
        %1698 = vmatprep.subr.bf16.mxu0 0
        %1699 = vmatpush2.bf16.xpose.msra.mxu0 0
        %1700 = vmatprep.subr.bf16.mxu0 0
        %1701 = vmatpush2.bf16.xpose.msra.mxu0 0
        %1702 = vmatprep.subr.bf16.mxu0 0
        %1703 = vmatpush2.bf16.xpose.msra.mxu0 0
        %1704 = vmatprep.subr.bf16.mxu0 0
        %1705 = vmatpush2.bf16.xpose.msra.mxu0 0
        %1706 = vmatprep.subr.bf16.mxu0 0
        %1707 = vmatpush2.bf16.xpose.msra.mxu0 0
        %1708 = vmatprep.subr.bf16.mxu0 0
        %1709 = vmatpush2.bf16.xpose.msra.mxu0 0
        %1710 = vmatprep.mubr.bf16.mxu0 0
        %1711 = vmatmul.mubr.bf16.gmra.mxu0 %v1673
        %v1712 = vpop.f32.mrf.mxu0
        %v1713 = vadd.f32 0.0, %v1712
        %v1714 = vpop.f32.mrf.mxu0
        %v1715 = vpop.f32.mrf.mxu0
        %v1716 = vpop.f32.mrf.mxu0
        %1717 = vdwg.mxu0
        %v1718 = vmul.f32 %v1713, 0.35355338
        %v1719 = vsel %vm595, %v1718, -inf
        %1720 = vmax.xlane.f32.xlu0 %v1719
        %v1721 = vpop.xlane.xlu0 %1720
        %v1722 = vsub.f32 %v1718, %v1721
        %v1723 = vmul.f32 %v1722, 1.442695
        %v1724 = vpow.pop %v1723
        %v1725 = vsel %vm595, %v1724, 0.0
        %1726 = vadd.xlane.f32.xlu0 %v1725
        %v1727 = vpop.xlane.xlu0 %1726
        %v1728 = vrcp.pop %v1727
        %v1729 = vmul.f32 %v1724, %v1728
        %v1730 = vpack.c.bf16 %v1729, %v1729
        %1731 = vrot.lane.b32.xlu0 %v1335, 40
        %v1732 = vpop.permute.xlu0 %1731
        %v1734 = vsel %vm610, %v1730, 0
        %v1737 = vand.u32 %v1732, %v617
        %1739 = vmatprep.subr.bf16.mxu0 0
        %1740 = vmatpush1.bf16.msra.mxu0 0
        %1741 = vmatprep.subr.bf16.mxu0 0
        %1742 = vmatpush1.bf16.msra.mxu0 0
        %1743 = vmatprep.subr.bf16.mxu0 0
        %1744 = vmatpush1.bf16.msra.mxu0 0
        %1745 = vmatprep.subr.bf16.mxu0 0
        %1746 = vmatpush1.bf16.msra.mxu0 0
        %1747 = vmatprep.subr.bf16.mxu0 0
        %1748 = vmatpush1.bf16.msra.mxu0 0
        %1749 = vmatprep.subr.bf16.mxu0 0
        %1750 = vmatpush1.bf16.msra.mxu0 0
        %1751 = vmatprep.subr.bf16.mxu0 0
        %1752 = vmatpush1.bf16.msra.mxu0 0
        %1753 = vmatprep.subr.bf16.mxu0 0
        %1754 = vmatpush1.bf16.msra.mxu0 %v1737
        %1755 = vmatprep.subr.bf16.mxu0 0
        %1756 = vmatpush2.bf16.msra.mxu0 0
        %1757 = vmatprep.subr.bf16.mxu0 0
        %1758 = vmatpush2.bf16.msra.mxu0 0
        %1759 = vmatprep.subr.bf16.mxu0 0
        %1760 = vmatpush2.bf16.msra.mxu0 0
        %1761 = vmatprep.subr.bf16.mxu0 0
        %1762 = vmatpush2.bf16.msra.mxu0 0
        %1763 = vmatprep.subr.bf16.mxu0 0
        %1764 = vmatpush2.bf16.msra.mxu0 0
        %1765 = vmatprep.subr.bf16.mxu0 0
        %1766 = vmatpush2.bf16.msra.mxu0 0
        %1767 = vmatprep.subr.bf16.mxu0 0
        %1768 = vmatpush2.bf16.msra.mxu0 0
        %1769 = vmatprep.subr.bf16.mxu0 0
        %1770 = vmatpush2.bf16.msra.mxu0 0
        %1771 = vmatprep.mubr.bf16.mxu0 0
        %1772 = vmatmul.mubr.bf16.gmra.mxu0 %v1734
        %v1773 = vpop.f32.mrf.mxu0
        %v1774 = vadd.f32 0.0, %v1773
        %v1775 = vpop.f32.mrf.mxu0
        %v1776 = vpop.f32.mrf.mxu0
        %v1777 = vpop.f32.mrf.mxu0
        %1778 = vdwg.mxu0
        %1780 = vrot.lane.b32.xlu0 %v1552, 8
        %v1781 = vpop.permute.xlu0 %1780
        %1784 = vrot.lane.b32.xlu0 %v1663, 16
        %v1785 = vpop.permute.xlu0 %1784
        %1788 = vrot.lane.b32.xlu0 %v1774, 24
        %v1789 = vpop.permute.xlu0 %1788
        %v1791 = vsel %vm547, %v1441, %v1781
        %v1792 = vsel %vm1007, %v1791, %v1785
        %v1793 = vsel %vm1009, %v1792, %v1789
        %v1794 = vpack.c.bf16 %v1793, %v1793
        %v1795 = vlaneseq
        %v1796 = vshrl.u32 %v1795, 7
        %v1797 = vsub.s32 2, %v1796
        %v1798 = vrot.slane %v1255, %v1797
        %v1803 = vunpack.c.l.b16 %v1238
        %v1804 = vunpack.c.l.b16 %v1239
        %v1805 = vunpack.c.l.b16 %v1240
        %v1806 = vunpack.c.l.b16 %v1241
        %v1807 = vpack.c.b16 %v1804, %v1803
        %v1808 = vpack.c.b16 %v1806, %v1805
        %v1812 = vsel %vm499, %v1794, 0
        %1814 = vmatprep.subr.bf16.mxu0 0
        %1815 = vmatpush1.bf16.msra.mxu0 0
        %1816 = vmatprep.subr.bf16.mxu0 0
        %1817 = vmatpush1.bf16.msra.mxu0 0
        %1818 = vmatprep.subr.bf16.mxu0 0
        %1819 = vmatpush1.bf16.msra.mxu0 0
        %1820 = vmatprep.subr.bf16.mxu0 0
        %1821 = vmatpush1.bf16.msra.mxu0 0
        %1822 = vmatprep.subr.bf16.mxu0 0
        %1823 = vmatpush1.bf16.msra.mxu0 0
        %1824 = vmatprep.subr.bf16.mxu0 0
        %1825 = vmatpush1.bf16.msra.mxu0 0
        %1826 = vmatprep.subr.bf16.mxu0 0
        %1827 = vmatpush1.bf16.msra.mxu0 %v1808
        %1828 = vmatprep.subr.bf16.mxu0 0
        %1829 = vmatpush1.bf16.msra.mxu0 %v1807
        %1830 = vmatprep.subr.bf16.mxu0 0
        %1831 = vmatpush2.bf16.msra.mxu0 0
        %1832 = vmatprep.subr.bf16.mxu0 0
        %1833 = vmatpush2.bf16.msra.mxu0 0
        %1834 = vmatprep.subr.bf16.mxu0 0
        %1835 = vmatpush2.bf16.msra.mxu0 0
        %1836 = vmatprep.subr.bf16.mxu0 0
        %1837 = vmatpush2.bf16.msra.mxu0 0
        %1838 = vmatprep.subr.bf16.mxu0 0
        %1839 = vmatpush2.bf16.msra.mxu0 0
        %1840 = vmatprep.subr.bf16.mxu0 0
        %1841 = vmatpush2.bf16.msra.mxu0 0
        %1842 = vmatprep.subr.bf16.mxu0 0
        %1843 = vmatpush2.bf16.msra.mxu0 0
        %1844 = vmatprep.subr.bf16.mxu0 0
        %1845 = vmatpush2.bf16.msra.mxu0 0
        %1846 = vmatprep.mubr.bf16.mxu0 0
        %1847 = vmatmul.mubr.bf16.gmra.mxu0 %v1812
        %v1848 = vpop.f32.mrf.mxu0
        %v1849 = vadd.f32 %v1798, %v1848
        %v1850 = vpop.f32.mrf.mxu0
        %v1851 = vpop.f32.mrf.mxu0
        %v1852 = vpop.f32.mrf.mxu0
        %1853 = vdwg.mxu0
        %v1854 = vadd.f32 %v1232, %v1849
        %v1855 = vsel %vm461, %v1854, 0.0
        %1856 = vadd.xlane.f32.xlu0 %v1855
        %v1857 = vpop.xlane.xlu0 %1856
        %v1858 = vmul.f32 %v1857, %v465
        %v1859 = vsub.f32 %v1854, %v1858
        %v1860 = vmul.f32 %v1859, %v1859
        %v1861 = vsel %vm461, %v1860, 0.0
        %1862 = vadd.xlane.f32.xlu0 %v1861
        %v1863 = vpop.xlane.xlu0 %1862
        %v1864 = vmul.f32 %v1863, %v465
        %v1865 = vadd.f32 %v1864, 1e-05
        %v1866 = vrsqrt.pop %v1865
        %v1867 = vmul.f32 %v1859, %v1866
        %v1868 = vlaneseq
        %v1869 = vshrl.u32 %v1868, 7
        %v1870 = vsub.s32 3, %v1869
        %v1871 = vrot.slane %v1255, %v1870
        %v1872 = vmul.f32 %v1867, %v1871
        %v1873 = vlaneseq
        %v1874 = vshrl.u32 %v1873, 7
        %v1875 = vsub.s32 4, %v1874
        %v1876 = vrot.slane %v1255, %v1875
        %v1877 = vadd.f32 %v1872, %v1876
        %v1878 = vpack.c.bf16 %v1877, %v1877
        %v1879 = vlaneseq
        %v1880 = vshrl.u32 %v1879, 7
        %v1881 = vsub.s32 6, %v1880
        %v1882 = vrot.slane %v1255, %v1881
        %v1887 = vunpack.c.l.b16 %v1242
        %v1888 = vunpack.c.l.b16 %v1243
        %v1889 = vunpack.c.l.b16 %v1244
        %v1890 = vunpack.c.l.b16 %v1245
        %v1891 = vpack.c.b16 %v1888, %v1887
        %v1892 = vpack.c.b16 %v1890, %v1889
        %v1896 = vsel %vm499, %v1878, 0
        %1898 = vmatprep.subr.bf16.mxu0 0
        %1899 = vmatpush1.bf16.msra.mxu0 0
        %1900 = vmatprep.subr.bf16.mxu0 0
        %1901 = vmatpush1.bf16.msra.mxu0 0
        %1902 = vmatprep.subr.bf16.mxu0 0
        %1903 = vmatpush1.bf16.msra.mxu0 0
        %1904 = vmatprep.subr.bf16.mxu0 0
        %1905 = vmatpush1.bf16.msra.mxu0 0
        %1906 = vmatprep.subr.bf16.mxu0 0
        %1907 = vmatpush1.bf16.msra.mxu0 0
        %1908 = vmatprep.subr.bf16.mxu0 0
        %1909 = vmatpush1.bf16.msra.mxu0 0
        %1910 = vmatprep.subr.bf16.mxu0 0
        %1911 = vmatpush1.bf16.msra.mxu0 %v1892
        %1912 = vmatprep.subr.bf16.mxu0 0
        %1913 = vmatpush1.bf16.msra.mxu0 %v1891
        %1914 = vmatprep.subr.bf16.mxu0 0
        %1915 = vmatpush2.bf16.msra.mxu0 0
        %1916 = vmatprep.subr.bf16.mxu0 0
        %1917 = vmatpush2.bf16.msra.mxu0 0
        %1918 = vmatprep.subr.bf16.mxu0 0
        %1919 = vmatpush2.bf16.msra.mxu0 0
        %1920 = vmatprep.subr.bf16.mxu0 0
        %1921 = vmatpush2.bf16.msra.mxu0 0
        %1922 = vmatprep.subr.bf16.mxu0 0
        %1923 = vmatpush2.bf16.msra.mxu0 0
        %1924 = vmatprep.subr.bf16.mxu0 0
        %1925 = vmatpush2.bf16.msra.mxu0 0
        %1926 = vmatprep.subr.bf16.mxu0 0
        %1927 = vmatpush2.bf16.msra.mxu0 0
        %1928 = vmatprep.subr.bf16.mxu0 0
        %1929 = vmatpush2.bf16.msra.mxu0 0
        %1930 = vmatprep.mubr.bf16.mxu0 0
        %1931 = vmatmul.mubr.bf16.gmra.mxu0 %v1896
        %v1932 = vpop.f32.mrf.mxu0
        %v1933 = vadd.f32 %v1882, %v1932
        %v1934 = vpop.f32.mrf.mxu0
        %v1935 = vpop.f32.mrf.mxu0
        %v1936 = vpop.f32.mrf.mxu0
        %1937 = vdwg.mxu0
        %v1938 = vmul.f32 %v1933, 0.5
        %v1939 = vmul.f32 %v1933, 0.70710677
        %v1940 = verf.f32.pop %v1939
        %v1941 = vadd.f32 %v1940, 1.0
        %v1942 = vmul.f32 %v1938, %v1941
        %v1943 = vpack.c.bf16 %v1942, %v1942
        %v1944 = vlaneseq
        %v1945 = vshrl.u32 %v1944, 7
        %v1946 = vsub.s32 5, %v1945
        %v1947 = vrot.slane %v1255, %v1946
        %v1956 = vunpack.c.l.b16 %v1246
        %v1957 = vunpack.c.l.b16 %v1247
        %v1958 = vunpack.c.l.b16 %v1248
        %v1959 = vunpack.c.l.b16 %v1249
        %v1960 = vunpack.c.l.b16 %v1250
        %v1961 = vunpack.c.l.b16 %v1251
        %v1962 = vunpack.c.l.b16 %v1252
        %v1963 = vunpack.c.l.b16 %v1253
        %v1964 = vpack.c.b16 %v1957, %v1956
        %v1965 = vpack.c.b16 %v1959, %v1958
        %v1966 = vpack.c.b16 %v1961, %v1960
        %v1967 = vpack.c.b16 %v1963, %v1962
        %v1973 = vsel %vm385, %v1943, 0
        %1975 = vmatprep.subr.bf16.mxu0 0
        %1976 = vmatpush1.bf16.msra.mxu0 0
        %1977 = vmatprep.subr.bf16.mxu0 0
        %1978 = vmatpush1.bf16.msra.mxu0 0
        %1979 = vmatprep.subr.bf16.mxu0 0
        %1980 = vmatpush1.bf16.msra.mxu0 0
        %1981 = vmatprep.subr.bf16.mxu0 0
        %1982 = vmatpush1.bf16.msra.mxu0 0
        %1983 = vmatprep.subr.bf16.mxu0 0
        %1984 = vmatpush1.bf16.msra.mxu0 %v1967
        %1985 = vmatprep.subr.bf16.mxu0 0
        %1986 = vmatpush1.bf16.msra.mxu0 %v1966
        %1987 = vmatprep.subr.bf16.mxu0 0
        %1988 = vmatpush1.bf16.msra.mxu0 %v1965
        %1989 = vmatprep.subr.bf16.mxu0 0
        %1990 = vmatpush1.bf16.msra.mxu0 %v1964
        %1991 = vmatprep.subr.bf16.mxu0 0
        %1992 = vmatpush2.bf16.msra.mxu0 0
        %1993 = vmatprep.subr.bf16.mxu0 0
        %1994 = vmatpush2.bf16.msra.mxu0 0
        %1995 = vmatprep.subr.bf16.mxu0 0
        %1996 = vmatpush2.bf16.msra.mxu0 0
        %1997 = vmatprep.subr.bf16.mxu0 0
        %1998 = vmatpush2.bf16.msra.mxu0 0
        %1999 = vmatprep.subr.bf16.mxu0 0
        %2000 = vmatpush2.bf16.msra.mxu0 0
        %2001 = vmatprep.subr.bf16.mxu0 0
        %2002 = vmatpush2.bf16.msra.mxu0 0
        %2003 = vmatprep.subr.bf16.mxu0 0
        %2004 = vmatpush2.bf16.msra.mxu0 0
        %2005 = vmatprep.subr.bf16.mxu0 0
        %2006 = vmatpush2.bf16.msra.mxu0 0
        %2007 = vmatprep.mubr.bf16.mxu0 0
        %2008 = vmatmul.mubr.bf16.gmra.mxu0 %v1973
        %v2009 = vpop.f32.mrf.mxu0
        %v2010 = vadd.f32 %v1947, %v2009
        %v2011 = vpop.f32.mrf.mxu0
        %v2012 = vpop.f32.mrf.mxu0
        %v2013 = vpop.f32.mrf.mxu0
        %2014 = vdwg.mxu0
        %v2015 = vadd.f32 %v1854, %v2010
        %vm2016 = vcmask 253952
        %v2017 = vsel %vm2016, %v2015, 0.0
        %2018 = vadd.xlane.f32.xlu0 %v2017
        %v2019 = vpop.xlane.xlu0 %2018
        %v2020 = vmul.f32 %v2019, %v465
        %v2021 = vsub.f32 %v2015, %v2020
        %v2022 = vmul.f32 %v2021, %v2021
        %v2023 = vsel %vm2016, %v2022, 0.0
        %2024 = vadd.xlane.f32.xlu0 %v2023
        %v2025 = vpop.xlane.xlu0 %2024
        %v2026 = vmul.f32 %v2025, %v465
        %v2027 = vadd.f32 %v2026, 1e-05
        %v2028 = vrsqrt.pop %v2027
        %v2029 = vmul.f32 %v2021, %v2028
        %v2030 = vrot.slane %v277, 7
        %v2032 = vmul.f32 %v2029, %v2030
        %v2033 = vadd.f32 %v2032, %v278
        %v2034 = vpack.c.bf16 %v2033, %v2033
        %v2035 = vld [vmem:[%s5] sm:$0xf]
        %v2036 = vld [vmem:[%s5 + $0x4] sm:$0xf]
        %v2037 = vld [vmem:[%s5 + $0x8] sm:$0xf]
        %v2038 = vld [vmem:[%s5 + $0xc] sm:$0xf]
        %v2039 = vld [vmem:[%s6] sm:$0x1]
        %v2044 = vunpack.c.l.b16 %v2035
        %v2045 = vunpack.c.l.b16 %v2036
        %v2046 = vunpack.c.l.b16 %v2037
        %v2047 = vunpack.c.l.b16 %v2038
        %v2048 = vpack.c.b16 %v2045, %v2044
        %v2049 = vpack.c.b16 %v2047, %v2046
        %v2053 = vsel %vm499, %v2034, 0
        %2055 = vmatprep.subr.bf16.mxu0 0
        %2056 = vmatpush1.bf16.msra.mxu0 0
        %2057 = vmatprep.subr.bf16.mxu0 0
        %2058 = vmatpush1.bf16.msra.mxu0 0
        %2059 = vmatprep.subr.bf16.mxu0 0
        %2060 = vmatpush1.bf16.msra.mxu0 0
        %2061 = vmatprep.subr.bf16.mxu0 0
        %2062 = vmatpush1.bf16.msra.mxu0 0
        %2063 = vmatprep.subr.bf16.mxu0 0
        %2064 = vmatpush1.bf16.msra.mxu0 0
        %2065 = vmatprep.subr.bf16.mxu0 0
        %2066 = vmatpush1.bf16.msra.mxu0 0
        %2067 = vmatprep.subr.bf16.mxu0 0
        %2068 = vmatpush1.bf16.msra.mxu0 %v2049
        %2069 = vmatprep.subr.bf16.mxu0 0
        %2070 = vmatpush1.bf16.msra.mxu0 %v2048
        %2071 = vmatprep.subr.bf16.mxu0 0
        %2072 = vmatpush2.bf16.msra.mxu0 0
        %2073 = vmatprep.subr.bf16.mxu0 0
        %2074 = vmatpush2.bf16.msra.mxu0 0
        %2075 = vmatprep.subr.bf16.mxu0 0
        %2076 = vmatpush2.bf16.msra.mxu0 0
        %2077 = vmatprep.subr.bf16.mxu0 0
        %2078 = vmatpush2.bf16.msra.mxu0 0
        %2079 = vmatprep.subr.bf16.mxu0 0
        %2080 = vmatpush2.bf16.msra.mxu0 0
        %2081 = vmatprep.subr.bf16.mxu0 0
        %2082 = vmatpush2.bf16.msra.mxu0 0
        %2083 = vmatprep.subr.bf16.mxu0 0
        %2084 = vmatpush2.bf16.msra.mxu0 0
        %2085 = vmatprep.subr.bf16.mxu0 0
        %2086 = vmatpush2.bf16.msra.mxu0 0
        %2087 = vmatprep.mubr.bf16.mxu0 0
        %2088 = vmatmul.mubr.bf16.gmra.mxu0 %v2053
        %v2089 = vpop.f32.mrf.mxu0
        %v2090 = vadd.f32 %v2039, %v2089
        %v2091 = vpop.f32.mrf.mxu0
        %v2092 = vpop.f32.mrf.mxu0
        %v2093 = vpop.f32.mrf.mxu0
        %2094 = vdwg.mxu0
        %2095 = vst [vmem:[%s270] sm:$0x1] %v2090
        %s2096 = sand.u32 %s181, 1
        %s2097 = scalar_lea.sflag [#allocation3], %s2096
        %s2098 = sand.u32 %s181, 1
        %s2099 = scalar_lea.vmem [#allocation2], %s2098
        // Predicated region
        $region49: #{vit_forward.1} parent=47 // pred_check
          %p2100 = pneg %p191
        $region50: #{vit_forward.1} parent=47 // pred_check_branch
          %2102 = sbr.rel (%p2100) target = $region52
        $region51: #{vit_forward.1} parent=47 // pred_region
          %s2104 = ssub.s32 16, 16
          %2105 = vsyncadd %s2097, %s2104
          %s2106 = smul.addr %s21, 16
          %s2107 = scalar_lea.hbm %s7, %s2106
          %s2109 = sshll.u32 %s2099, 4
          %s2110 = int_to_ptr.vmem [resolvable:$true] %s2109
          %2112 = dma.vmem_to_hbm [thread:$0]  %s2110, 16, %s2107, %s2097
        $region52: #{vit_forward.1} parent=47 // pred_fallthru
          _
      $region48: #{vit_forward.1} parent=5 // pred_fallthru
        _
      %p2113 = scmp.le.s32.totalorder 2, %s16
      // Predicated region
      $region53: #{vit_forward.1} parent=5 // pred_check
        %p2114 = pneg %p2113
      $region54: #{vit_forward.1} parent=5 // pred_check_branch
        %2116 = sbr.rel (%p2114) target = $region56
      $region55: #{vit_forward.1} parent=5 // pred_region
        %s2117 = ssub.s32 %s16, 2
        // Predicated region
        $region57: #{vit_forward.1} parent=55 // pred_check
          %p2118 = pneg %p197
        $region58: #{vit_forward.1} parent=55 // pred_check_branch
          %2120 = sbr.rel (%p2118) target = $region60
        $region59: #{vit_forward.1} parent=55 // pred_region
          %s2121 = sand.u32 %s182, 1
          %s2122 = scalar_lea.sflag [#allocation3], %s2121
          %s2123 = sand.u32 %s182, 1
          %s2124 = scalar_lea.vmem [#allocation2], %s2123
          %2125 = dma.done %s2122, 16
        $region60: #{vit_forward.1} parent=55 // pred_fallthru
          _
      $region56: #{vit_forward.1} parent=5 // pred_fallthru
        _
    $region6: #{vit_forward.1} parent=1 // loop_footer
      %s20 = sadd.s32 1, %s16
    $region7: #{vit_forward.1} parent=1 // loop_footer_branch
      %15 = sbr.rel target = $region3
    $region8: #{vit_forward.1} parent=1 // loop_exit
      _
    %2126 = vsyncpa [#allocation3], 1
    %s2127 = scalar_lea.sflag [#allocation3], 1
    %2128 = vsyncpa %s2127, 1

</llo_original>
